<compile_context>
chip_gen: v7x
topology: tpu7x:2x2x1
jax: 0.10.0
libtpu: 0.0.40
codegen_flags: <defaults>
</compile_context>

<pallas_src>
import jax
import jax.numpy as jnp
from jax import lax
from jax.experimental import pallas as pl
from jax.experimental.pallas import tpu as pltpu


# ----------------------------------------------------------------------------
# Pallas kernel: fused correlation -> softmax -> warp -> key-argmax
# ----------------------------------------------------------------------------
def _subnet_warp_kernel(feat_t_ref, feat_r_ref, ref_ab_ref,
                        warped_ref, attn_ref, corr_t_ref, idx_ref):
    # feat_t_ref : (1, TQ, Cf)  query tile of target-gray features
    # feat_r_ref : (1, Sk, Cf)  reference-gray features   (resident across q)
    # ref_ab_ref : (1, 2,  Sk)  reference AB channels      (resident across q)
    # warped_ref : (1, 2,  Sq)  lane-dense, resident across q (1 HBM store / b)
    # attn_ref   : (1, TQ, Sk)
    # corr_t_ref : (1, Sk, TQ)  corr_map tile (keys-major, matches torch dim=1)
    # idx_ref    : (1, TQ, 1)   int32 argmax over keys (fused, f32 precision)
    q = pl.program_id(1)
    tq = feat_t_ref.shape[1]

    ftq = feat_t_ref[0].astype(jnp.float32)        # (TQ, Cf)
    frk = feat_r_ref[0].astype(jnp.float32)        # (Sk, Cf)
    ab = ref_ab_ref[0].astype(jnp.float32)         # (2,  Sk)

    # correlation (TQ, Sk): contract over Cf -- A @ B^T form, MXU, no transpose
    corr = lax.dot_general(ftq, frk, (((1,), (1,)), ((), ())),
                           preferred_element_type=jnp.float32)

    # softmax over the key axis; division -> EUP approximate reciprocal
    m = jnp.max(corr, axis=-1, keepdims=True)
    e = jnp.exp(corr - m)
    s = jnp.sum(e, axis=-1, keepdims=True)
    attn = e * pl.reciprocal(s, approx=True)

    # warp: warped[c, q] = sum_k ab[c, k] * attn[q, k]  (== bmm(ref_AB, attn^T))
    warped = lax.dot_general(ab, attn, (((1,), (1,)), ((), ())),
                             preferred_element_type=jnp.float32)      # (2, TQ)

    # corr_map tile (Sk, TQ): second cheap MXU matmul instead of corr.T (XLU)
    corr_t = lax.dot_general(frk, ftq, (((1,), (1,)), ((), ())),
                             preferred_element_type=jnp.float32)

    # fused key-argmax (first-max tie-break, matches torch/jnp argmax)
    ids = lax.broadcasted_iota(jnp.int32, corr.shape, 1)
    idx = jnp.min(jnp.where(corr == m, ids, jnp.iinfo(jnp.int32).max),
                  axis=-1, keepdims=True)                             # (TQ, 1)

    attn_ref[0] = attn.astype(attn_ref.dtype)
    corr_t_ref[0] = corr_t.astype(corr_t_ref.dtype)
    idx_ref[0] = idx.astype(jnp.int32)

    # accumulate q-tiles into the resident (2, Sq) output block -> one
    # lane-dense HBM writeback per batch instead of masked (2, TQ) stores.
    start = pl.multiple_of(q * tq, tq)
    warped_ref[0, :, pl.ds(start, tq)] = warped.astype(warped_ref.dtype)


def _choose_tq(sq, sk, cf, budget_bytes=12 * 1024 * 1024):
    """Largest TQ (multiple of 128, dividing Sq) whose double-buffered f32
    per-step tiles (attn + corr_map + feat_t) stay under a v7x-safe budget."""
    if sq % 128 != 0:
        return sq                               # full-extent block fallback
    best = 128
    t = 128
    while t <= sq:
        step_bytes = 2 * 4 * (2 * t * sk + t * cf)
        if sq % t == 0 and step_bytes <= budget_bytes:
            best = t
        t += 128
    return best


def subnet_attention_warp(feat_t, feat_r, ref_ab, *, tq=None,
                          attn_dtype=jnp.float32):
    """feat_t: (B, Sq, Cf), feat_r: (B, Sk, Cf), ref_ab: (B, 2, Sk).
    Returns warped_AB (B, 2, Sq), attention (B, Sq, Sk),
            corr_map (B, Sk, Sq), key_argmax (B, Sq, 1) int32."""
    B, Sq, Cf = feat_t.shape
    _, Sk, _ = feat_r.shape

    # Pad the contraction (channel) axis to 128: full MXU systolic depth and
    # 128-lane-aligned feature tiles.  Zero channels add nothing to corr.
    cf_pad = 128 if Cf <= 128 else ((Cf + 7) // 8) * 8
    if cf_pad != Cf:
        pad = ((0, 0), (0, 0), (0, cf_pad - Cf))
        feat_t = jnp.pad(feat_t, pad)
        feat_r = jnp.pad(feat_r, pad)

    if tq is None:
        tq = _choose_tq(Sq, Sk, cf_pad)
    assert Sq % tq == 0, "query tile must divide Sq"
    n_q = Sq // tq

    out_shapes = (
        jax.ShapeDtypeStruct((B, 2, Sq), jnp.float32),
        jax.ShapeDtypeStruct((B, Sq, Sk), attn_dtype),
        jax.ShapeDtypeStruct((B, Sk, Sq), jnp.float32),
        jax.ShapeDtypeStruct((B, Sq, 1), jnp.int32),
    )

    grid_spec = pltpu.PrefetchScalarGridSpec(
        num_scalar_prefetch=0,
        grid=(B, n_q),
        in_specs=[
            pl.BlockSpec((1, tq, cf_pad), lambda b, q: (b, q, 0)),
            pl.BlockSpec((1, Sk, cf_pad), lambda b, q: (b, 0, 0)),
            pl.BlockSpec((1, 2, Sk), lambda b, q: (b, 0, 0)),
        ],
        out_specs=[
            # resident across q: one lane-dense (2, Sq) writeback per batch
            pl.BlockSpec((1, 2, Sq), lambda b, q: (b, 0, 0)),
            pl.BlockSpec((1, tq, Sk), lambda b, q: (b, q, 0)),
            pl.BlockSpec((1, Sk, tq), lambda b, q: (b, 0, q)),
            pl.BlockSpec((1, tq, 1), lambda b, q: (b, q, 0)),
        ],
    )

    return pl.pallas_call(
        _subnet_warp_kernel,
        out_shape=out_shapes,
        grid_spec=grid_spec,
        compiler_params=pltpu.CompilerParams(
            dimension_semantics=("parallel", "arbitrary"),
            vmem_limit_bytes=64 * 1024 * 1024,
        ),
    )(feat_t, feat_r, ref_ab)


# ----------------------------------------------------------------------------
# Glue: pieces of Pix2PixModel that are plain tensor plumbing
# ----------------------------------------------------------------------------
def parse_LAB(image_LAB):
    """Exact port of Pix2PixModel.parse_LAB (NCHW)."""
    if image_LAB.ndim == 3:
        image_LAB = image_LAB[None]
    assert image_LAB.ndim == 4, "Pass 3D or 4D tensor"
    image_L = image_LAB[:, 0:1, :, :]
    image_A = image_LAB[:, 1:2, :, :]
    image_B = image_LAB[:, 2:3, :, :]
    image_AB = jnp.concatenate([image_A, image_B], axis=1)
    return image_L, image_AB


def make_synthetic_netG_params(key, cf):
    """Deterministic stand-in for netG's matching-subnet feature encoder."""
    k1, k2 = jax.random.split(key)
    w = jax.random.normal(k1, (1, cf), dtype=jnp.float32) * 0.1
    b = jax.random.normal(k2, (cf,), dtype=jnp.float32) * 0.01
    return w, b
# TODO(synk): full netG / netD / netE / VGG / FID / GANLoss come from the
# external `networks` module and are not reproducible from this file.


def encode_features(gray_nchw, w, b):
    """Stand-in 1x1 encoder; emits channels-last (B, S, Cf) so every in-kernel
    matmul is the MXU-friendly A @ B^T form (no transposes in the kernel)."""
    B = gray_nchw.shape[0]
    flat = gray_nchw.reshape(B, -1, 1)          # (B, S, 1)
    return flat * w[None] + b[None, None]       # (B, S, Cf)


@jax.jit
def pix2pix_subnet_forward(subnet_target_L_gray, subnet_ref_L_gray,
                           subnet_target_LAB, subnet_ref_LAB, w, b):
    """Reproduces Pix2PixModel.subnet_generate_fake + fake_LAB concat +
    torch.max(corr_map, dim=1)[1].unsqueeze(1).  All images are NCHW f32."""
    B, _, Hq, Wq = subnet_target_L_gray.shape
    _, _, Hk, Wk = subnet_ref_L_gray.shape
    Sk = Hk * Wk

    subnet_target_L, _ = parse_LAB(subnet_target_LAB)
    _, subnet_ref_AB = parse_LAB(subnet_ref_LAB)

    feat_t = encode_features(subnet_target_L_gray, w, b)   # (B, Sq, Cf)
    feat_r = encode_features(subnet_ref_L_gray, w, b)      # (B, Sk, Cf)

    # F.interpolate(subnet_ref_AB, size=(Hk, Wk)) is identity here (same size)
    ref_ab_flat = subnet_ref_AB.reshape(B, 2, Sk)

    # ---- Pallas hot path: correlation + softmax + warp + key-argmax ----
    warped_flat, attn_flat, corr_map_flat, key_idx = subnet_attention_warp(
        feat_t, feat_r, ref_ab_flat)

    warped_AB = warped_flat.reshape(B, 2, Hq, Wq)
    attention = attn_flat.reshape(B, Hq, Wq, Hk, Wk)
    corr_map = corr_map_flat.reshape(B, Sk, Hq, Wq)

    # subnet_fake_LAB = cat([target_L, fake_AB], dim=1)
    fake_LAB = jnp.concatenate([subnet_target_L, warped_AB], axis=1)

    # torch.max(corr_map, dim=1)[1].unsqueeze(1)  -- fused inside the kernel
    generated_index = key_idx.reshape(B, 1, Hq, Wq)

    return fake_LAB, attention, corr_map, generated_index


# ----------------------------------------------------------------------------
# Pure-JAX reference for the fused kernel (correctness check)
# ----------------------------------------------------------------------------
def _warp_ref(feat_t, feat_r, ref_ab):
    corr = jnp.einsum("bqc,bkc->bqk", feat_t, feat_r)
    attn = jax.nn.softmax(corr, axis=-1)
    warped = jnp.einsum("bck,bqk->bcq", ref_ab, attn)
    return warped, attn, jnp.swapaxes(corr, 1, 2)


if __name__ == "__main__":
    key = jax.random.PRNGKey(0)
    k_img, k_ref, k_lab_t, k_lab_r, k_net = jax.random.split(key, 5)

    B, H, W, Cf = 2, 16, 16, 32   # Sq = Sk = 256 (lane-aligned)

    subnet_target_L_gray = jax.random.normal(k_img, (B, 1, H, W), jnp.float32)
    subnet_ref_L_gray = jax.random.normal(k_ref, (B, 1, H, W), jnp.float32)
    subnet_target_LAB = jax.random.normal(k_lab_t, (B, 3, H, W), jnp.float32)
    subnet_ref_LAB = jax.random.normal(k_lab_r, (B, 3, H, W), jnp.float32)

    w, b = make_synthetic_netG_params(k_net, Cf)

    fake_LAB, attention, corr_map, gen_idx = pix2pix_subnet_forward(
        subnet_target_L_gray, subnet_ref_L_gray,
        subnet_target_LAB, subnet_ref_LAB, w, b)
    jax.block_until_ready((fake_LAB, attention, corr_map, gen_idx))

    # shape/dtype checks (match the torch module's conventions)
    assert fake_LAB.shape == (B, 3, H, W)
    assert attention.shape == (B, H, W, H, W)
    assert corr_map.shape == (B, H * W, H, W)
    assert gen_idx.shape == (B, 1, H, W)
    assert gen_idx.dtype == jnp.int32

    # numerical check of the Pallas hot path against a pure-JAX reference,
    # exercising an explicit multi-tile query grid (tq=128 -> grid (B, 2))
    feat_t = encode_features(subnet_target_L_gray, w, b)
    feat_r = encode_features(subnet_ref_L_gray, w, b)
    _, ref_AB = parse_LAB(subnet_ref_LAB)
    ref_ab_flat = ref_AB.reshape(B, 2, H * W)

    warped_gt, attn_gt, corr_gt = _warp_ref(feat_t, feat_r, ref_ab_flat)
    warped_pl, attn_pl, corr_pl, idx_pl = subnet_attention_warp(
        feat_t, feat_r, ref_ab_flat, tq=128)
    jax.block_until_ready((warped_pl, attn_pl, corr_pl, idx_pl))

    assert jnp.allclose(corr_pl, corr_gt, atol=1e-3, rtol=1e-3)
    # approx reciprocal in the softmax -> slightly relaxed tolerances
    assert jnp.allclose(attn_pl, attn_gt, atol=5e-3, rtol=5e-3)
    assert jnp.allclose(warped_pl, warped_gt, atol=1e-2, rtol=1e-2)

    # fused key-argmax agrees with an argmax over the emitted corr_map
    # (>= 99% match; disagreement only possible on float near-ties)
    idx_from_corr = jnp.argmax(corr_pl, axis=1)            # (B, Sq)
    match = jnp.mean((idx_pl[..., 0] == idx_from_corr).astype(jnp.float32))
    assert float(match) >= 0.99

    print("KERNEL_OK")
</pallas_src>

<mosaic_0001>
module attributes {stable_mosaic.version = 11 : i64} {
  func.func @_subnet_warp_kernel(%arg0: i32, %arg1: i32, %arg2: memref<1x256x128xf32, #tpu.memory_space<vmem>>, %arg3: memref<1x256x128xf32, #tpu.memory_space<vmem>>, %arg4: memref<1x2x256xf32, #tpu.memory_space<vmem>>, %arg5: memref<1x2x256xf32, #tpu.memory_space<vmem>>, %arg6: memref<1x256x256xf32, #tpu.memory_space<vmem>>, %arg7: memref<1x256x256xf32, #tpu.memory_space<vmem>>, %arg8: memref<1x256x1xi32, #tpu.memory_space<vmem>>) attributes {dimension_semantics = [#tpu.dimension_semantics<parallel>, #tpu.dimension_semantics<arbitrary>], iteration_bounds = array<i64: 2, 1>, scalar_prefetch = 0 : i64, scratch_operands = 0 : i64, tpu.core_type = #tpu.core_type<tc>, window_params = [{transform_indices = @transform_0, window_bounds = array<i64: 1, 256, 128>}, {transform_indices = @transform_1, window_bounds = array<i64: 1, 256, 128>}, {transform_indices = @transform_2, window_bounds = array<i64: 1, 2, 256>}, {transform_indices = @transform_3, window_bounds = array<i64: 1, 2, 256>}, {transform_indices = @transform_4, window_bounds = array<i64: 1, 256, 256>}, {transform_indices = @transform_5, window_bounds = array<i64: 1, 256, 256>}, {transform_indices = @transform_6, window_bounds = array<i64: 1, 256, 1>}]} {
    %c0 = arith.constant 0 : index
    %c0_0 = arith.constant 0 : index
    %c0_1 = arith.constant 0 : index
    %0 = vector.load %arg2[%c0, %c0_0, %c0_1] : memref<1x256x128xf32, #tpu.memory_space<vmem>>, vector<1x256x128xf32>
    %1 = vector.shape_cast %0 : vector<1x256x128xf32> to vector<256x128xf32>
    %c0_2 = arith.constant 0 : index
    %c0_3 = arith.constant 0 : index
    %c0_4 = arith.constant 0 : index
    %2 = vector.load %arg3[%c0_2, %c0_3, %c0_4] : memref<1x256x128xf32, #tpu.memory_space<vmem>>, vector<1x256x128xf32>
    %3 = vector.shape_cast %2 : vector<1x256x128xf32> to vector<256x128xf32>
    %c0_5 = arith.constant 0 : index
    %c0_6 = arith.constant 0 : index
    %c0_7 = arith.constant 0 : index
    %4 = vector.load %arg4[%c0_5, %c0_6, %c0_7] : memref<1x2x256xf32, #tpu.memory_space<vmem>>, vector<1x2x256xf32>
    %5 = vector.shape_cast %4 : vector<1x2x256xf32> to vector<2x256xf32>
    %cst = arith.constant dense<0.000000e+00> : vector<256x256xf32>
    %6 = tpu.matmul %1, %3, %cst {dimension_numbers = #tpu.dot_dimension_numbers<[1], [1], [0], [0], [0, 0, 1, 0], [], []>} : vector<256x128xf32>, vector<256x128xf32>, vector<256x256xf32> -> vector<256x256xf32>
    %cst_8 = arith.constant dense<0xFF800000> : vector<256xf32>
    %7 = vector.multi_reduction <maximumf>, %6, %cst_8 [1] : vector<256x256xf32> to vector<256xf32>
    %8 = vector.shape_cast %7 : vector<256xf32> to vector<256x1xf32>
    %9 = vector.broadcast %8 : vector<256x1xf32> to vector<256x256xf32>
    %10 = arith.subf %6, %9 : vector<256x256xf32>
    %11 = math.exp %10 : vector<256x256xf32>
    %cst_9 = arith.constant dense<0.000000e+00> : vector<256xf32>
    %12 = vector.multi_reduction <add>, %11, %cst_9 [1] : vector<256x256xf32> to vector<256xf32>
    %13 = vector.shape_cast %12 : vector<256xf32> to vector<256x1xf32>
    %14 = tpu.reciprocal %13 {approx = true} : vector<256x1xf32> -> vector<256x1xf32>
    %15 = vector.broadcast %14 : vector<256x1xf32> to vector<256x256xf32>
    %16 = arith.mulf %11, %15 : vector<256x256xf32>
    %cst_10 = arith.constant dense<0.000000e+00> : vector<2x256xf32>
    %17 = tpu.matmul %5, %16, %cst_10 {dimension_numbers = #tpu.dot_dimension_numbers<[1], [1], [0], [0], [0, 0, 1, 0], [], []>} : vector<2x256xf32>, vector<256x256xf32>, vector<2x256xf32> -> vector<2x256xf32>
    %cst_11 = arith.constant dense<0.000000e+00> : vector<256x256xf32>
    %18 = tpu.matmul %3, %1, %cst_11 {dimension_numbers = #tpu.dot_dimension_numbers<[1], [1], [0], [0], [0, 0, 1, 0], [], []>} : vector<256x128xf32>, vector<256x128xf32>, vector<256x256xf32> -> vector<256x256xf32>
    %19 = tpu.iota {dimensions = array<i32: 1>} : vector<256x256xi32>
    %20 = vector.broadcast %8 : vector<256x1xf32> to vector<256x256xf32>
    %21 = arith.cmpf oeq, %6, %20 : vector<256x256xf32>
    %c2147483647_i32 = arith.constant 2147483647 : i32
    %22 = vector.broadcast %c2147483647_i32 : i32 to vector<256x256xi32>
    %23 = arith.select %21, %19, %22 : vector<256x256xi1>, vector<256x256xi32>
    %cst_12 = arith.constant dense<2147483647> : vector<256xi32>
    %24 = vector.multi_reduction <minsi>, %23, %cst_12 [1] : vector<256x256xi32> to vector<256xi32>
    %25 = vector.shape_cast %24 : vector<256xi32> to vector<256x1xi32>
    %c0_13 = arith.constant 0 : index
    %c0_14 = arith.constant 0 : index
    %c0_15 = arith.constant 0 : index
    %26 = vector.load %arg6[%c0_13, %c0_14, %c0_15] : memref<1x256x256xf32, #tpu.memory_space<vmem>>, vector<1x256x256xf32>
    %27 = vector.shape_cast %26 : vector<1x256x256xf32> to vector<256x256xf32>
    %28 = vector.shape_cast %16 : vector<256x256xf32> to vector<1x256x256xf32>
    tpu.vector_store %arg6[%c0_13, %c0_14, %c0_15], %28 {strides = array<i32>} : memref<1x256x256xf32, #tpu.memory_space<vmem>>, vector<1x256x256xf32>,
    %c0_16 = arith.constant 0 : index
    %c0_17 = arith.constant 0 : index
    %c0_18 = arith.constant 0 : index
    %29 = vector.load %arg7[%c0_16, %c0_17, %c0_18] : memref<1x256x256xf32, #tpu.memory_space<vmem>>, vector<1x256x256xf32>
    %30 = vector.shape_cast %29 : vector<1x256x256xf32> to vector<256x256xf32>
    %31 = vector.shape_cast %18 : vector<256x256xf32> to vector<1x256x256xf32>
    tpu.vector_store %arg7[%c0_16, %c0_17, %c0_18], %31 {strides = array<i32>} : memref<1x256x256xf32, #tpu.memory_space<vmem>>, vector<1x256x256xf32>,
    %c0_19 = arith.constant 0 : index
    %c0_20 = arith.constant 0 : index
    %c0_21 = arith.constant 0 : index
    %32 = vector.load %arg8[%c0_19, %c0_20, %c0_21] : memref<1x256x1xi32, #tpu.memory_space<vmem>>, vector<1x256x1xi32>
    %33 = vector.shape_cast %32 : vector<1x256x1xi32> to vector<256x1xi32>
    %34 = vector.shape_cast %25 : vector<256x1xi32> to vector<1x256x1xi32>
    tpu.vector_store %arg8[%c0_19, %c0_20, %c0_21], %34 {strides = array<i32>} : memref<1x256x1xi32, #tpu.memory_space<vmem>>, vector<1x256x1xi32>,
    %c256_i32 = arith.constant 256 : i32
    %35 = arith.muli %arg1, %c256_i32 : i32
    %36 = tpu.assume_multiple %35, 256 : i32
    %c0_22 = arith.constant 0 : index
    %c0_23 = arith.constant 0 : index
    %37 = arith.index_cast %36 : i32 to index
    %38 = vector.load %arg5[%c0_22, %c0_23, %37] : memref<1x2x256xf32, #tpu.memory_space<vmem>>, vector<1x2x256xf32>
    %39 = vector.shape_cast %38 : vector<1x2x256xf32> to vector<2x256xf32>
    %40 = vector.shape_cast %17 : vector<2x256xf32> to vector<1x2x256xf32>
    tpu.vector_store %arg5[%c0_22, %c0_23, %37], %40 {strides = array<i32>} : memref<1x2x256xf32, #tpu.memory_space<vmem>>, vector<1x2x256xf32>,
    return
  }
  func.func @transform_0(%arg0: i32, %arg1: i32) -> (i32, i32, i32) {
    %c0_i32 = arith.constant 0 : i32
    %c0_i32_0 = arith.constant 0 : i32
    return %arg0, %arg1, %c0_i32 : i32, i32, i32
  }
  func.func @transform_1(%arg0: i32, %arg1: i32) -> (i32, i32, i32) {
    %c0_i32 = arith.constant 0 : i32
    %c0_i32_0 = arith.constant 0 : i32
    %c0_i32_1 = arith.constant 0 : i32
    return %arg0, %c0_i32, %c0_i32_0 : i32, i32, i32
  }
  func.func @transform_2(%arg0: i32, %arg1: i32) -> (i32, i32, i32) {
    %c0_i32 = arith.constant 0 : i32
    %c0_i32_0 = arith.constant 0 : i32
    %c0_i32_1 = arith.constant 0 : i32
    return %arg0, %c0_i32, %c0_i32_0 : i32, i32, i32
  }
  func.func @transform_3(%arg0: i32, %arg1: i32) -> (i32, i32, i32) {
    %c0_i32 = arith.constant 0 : i32
    %c0_i32_0 = arith.constant 0 : i32
    %c0_i32_1 = arith.constant 0 : i32
    return %arg0, %c0_i32, %c0_i32_0 : i32, i32, i32
  }
  func.func @transform_4(%arg0: i32, %arg1: i32) -> (i32, i32, i32) {
    %c0_i32 = arith.constant 0 : i32
    %c0_i32_0 = arith.constant 0 : i32
    return %arg0, %arg1, %c0_i32 : i32, i32, i32
  }
  func.func @transform_5(%arg0: i32, %arg1: i32) -> (i32, i32, i32) {
    %c0_i32 = arith.constant 0 : i32
    %c0_i32_0 = arith.constant 0 : i32
    return %arg0, %c0_i32, %arg1 : i32, i32, i32
  }
  func.func @transform_6(%arg0: i32, %arg1: i32) -> (i32, i32, i32) {
    %c0_i32 = arith.constant 0 : i32
    %c0_i32_0 = arith.constant 0 : i32
    return %arg0, %arg1, %c0_i32 : i32, i32, i32
  }
}

</mosaic_0001>

<llo_original>
// kernel: mul.15
$region0: #{mul.15}
  %s0 = inlined_call_operand.hbm [shape: f32[2,1,16,16], index: 0, kind: input, shape index: {}]
  %s1 = inlined_call_operand.vmem [shape: f32[2,256], index: 1, kind: output, shape index: {}]
  $region1: #{mul.15} parent=0
    #allocation0 [shape = 'u8[16384]{0}', space=vmem, size = 0x4000, scoped, tag = 'operand span for operand 0']
    #allocation1 [shape = 's32[1]{0}', space=sflag, size = 0x4, scoped, tag = 'scoped memory for mul.15']
    #allocation2 [shape = 'u8[8192]{0}', space=vmem, size = 0x2000, scoped, tag = 'scoped mem for output reshape']
    %2 = vsyncpa [#allocation1], 0
    %s4 = ssub.s32 512, 512
    %5 = vsyncadd [#allocation1], %s4
    %s7 = sshll.u32 [#allocation0], 4
    %s8 = int_to_ptr.vmem [resolvable:$true] %s7
    %10 = dma.hbm_to_vmem [thread:$0]  %s0, 512, %s8, [#allocation1]
    %11 = dma.done [#allocation1], 512
    %v12 = vld [vmem:[#allocation0] ss:$8 sm:$0xf]
    %vm13 = vcmask 130048
    %14 = vst.msk [vmem:[#allocation2] ss:$8 sm:$0x3] %vm13, %v12
    %s15 = scalar_lea.vmem [#allocation2], 4294967281
    %16 = vst.msk [vmem:[%s15] ss:$8 sm:$0xc] %vm13, %v12
    %s17 = scalar_lea.vmem [#allocation0], 7
    %s18 = smov 3
    %v19 = vld [vmem:[%s17] ss:$16 sm:%s18]
    %s20 = scalar_lea.vmem [#allocation0], 4294967279
    %s21 = smov 12
    %v22 = vld [vmem:[%s20] ss:$16 sm:%s21]
    %vm23 = vcmask 1043458
    %v24 = vsel %vm23, %v22, %v19
    %25 = vrot.lane.b32.xlu0 %v24, 112
    %v26 = vpop.permute.xlu0 %25
    %vm27 = vcmask 1048448
    %28 = vst.msk [vmem:[#allocation2] sm:$0x3] %vm27, %v26
    %s29 = scalar_lea.vmem [#allocation2], 6
    %30 = vst.msk [vmem:[%s29] sm:$0xc] %vm27, %v26
    %s31 = scalar_lea.vmem [#allocation0], 6
    %s32 = smov 3
    %v33 = vld [vmem:[%s31] ss:$16 sm:%s32]
    %s34 = scalar_lea.vmem [#allocation0], 4294967278
    %s35 = smov 12
    %v36 = vld [vmem:[%s34] ss:$16 sm:%s35]
    %vm37 = vcmask 1043458
    %v38 = vsel %vm37, %v36, %v33
    %39 = vrot.lane.b32.xlu0 %v38, 96
    %v40 = vpop.permute.xlu0 %39
    %vm41 = vcmask 917248
    %42 = vst.msk [vmem:[#allocation2] sm:$0x3] %vm41, %v40
    %s43 = scalar_lea.vmem [#allocation2], 6
    %44 = vst.msk [vmem:[%s43] sm:$0xc] %vm41, %v40
    %s45 = scalar_lea.vmem [#allocation0], 5
    %s46 = smov 3
    %v47 = vld [vmem:[%s45] ss:$16 sm:%s46]
    %s48 = scalar_lea.vmem [#allocation0], 4294967277
    %s49 = smov 12
    %v50 = vld [vmem:[%s48] ss:$16 sm:%s49]
    %vm51 = vcmask 1043458
    %v52 = vsel %vm51, %v50, %v47
    %53 = vrot.lane.b32.xlu0 %v52, 80
    %v54 = vpop.permute.xlu0 %53
    %vm55 = vcmask 786048
    %56 = vst.msk [vmem:[#allocation2] sm:$0x3] %vm55, %v54
    %s57 = scalar_lea.vmem [#allocation2], 6
    %58 = vst.msk [vmem:[%s57] sm:$0xc] %vm55, %v54
    %s59 = scalar_lea.vmem [#allocation0], 4
    %s60 = smov 3
    %v61 = vld [vmem:[%s59] ss:$16 sm:%s60]
    %s62 = scalar_lea.vmem [#allocation0], 4294967276
    %s63 = smov 12
    %v64 = vld [vmem:[%s62] ss:$16 sm:%s63]
    %vm65 = vcmask 1043458
    %v66 = vsel %vm65, %v64, %v61
    %67 = vrot.lane.b32.xlu0 %v66, 64
    %v68 = vpop.permute.xlu0 %67
    %vm69 = vcmask 654848
    %70 = vst.msk [vmem:[#allocation2] sm:$0x3] %vm69, %v68
    %s71 = scalar_lea.vmem [#allocation2], 6
    %72 = vst.msk [vmem:[%s71] sm:$0xc] %vm69, %v68
    %s73 = scalar_lea.vmem [#allocation0], 3
    %s74 = smov 3
    %v75 = vld [vmem:[%s73] ss:$16 sm:%s74]
    %s76 = scalar_lea.vmem [#allocation0], 4294967275
    %s77 = smov 12
    %v78 = vld [vmem:[%s76] ss:$16 sm:%s77]
    %vm79 = vcmask 1043458
    %v80 = vsel %vm79, %v78, %v75
    %81 = vrot.lane.b32.xlu0 %v80, 48
    %v82 = vpop.permute.xlu0 %81
    %vm83 = vcmask 523648
    %84 = vst.msk [vmem:[#allocation2] sm:$0x3] %vm83, %v82
    %s85 = scalar_lea.vmem [#allocation2], 6
    %86 = vst.msk [vmem:[%s85] sm:$0xc] %vm83, %v82
    %s87 = scalar_lea.vmem [#allocation0], 2
    %s88 = smov 3
    %v89 = vld [vmem:[%s87] ss:$16 sm:%s88]
    %s90 = scalar_lea.vmem [#allocation0], 4294967274
    %s91 = smov 12
    %v92 = vld [vmem:[%s90] ss:$16 sm:%s91]
    %vm93 = vcmask 1043458
    %v94 = vsel %vm93, %v92, %v89
    %95 = vrot.lane.b32.xlu0 %v94, 32
    %v96 = vpop.permute.xlu0 %95
    %vm97 = vcmask 392448
    %98 = vst.msk [vmem:[#allocation2] sm:$0x3] %vm97, %v96
    %s99 = scalar_lea.vmem [#allocation2], 6
    %100 = vst.msk [vmem:[%s99] sm:$0xc] %vm97, %v96
    %s101 = scalar_lea.vmem [#allocation0], 1
    %s102 = smov 3
    %v103 = vld [vmem:[%s101] ss:$16 sm:%s102]
    %s104 = scalar_lea.vmem [#allocation0], 4294967273
    %s105 = smov 12
    %v106 = vld [vmem:[%s104] ss:$16 sm:%s105]
    %vm107 = vcmask 1043458
    %v108 = vsel %vm107, %v106, %v103
    %109 = vrot.lane.b32.xlu0 %v108, 16
    %v110 = vpop.permute.xlu0 %109
    %vm111 = vcmask 261248
    %112 = vst.msk [vmem:[#allocation2] sm:$0x3] %vm111, %v110
    %s113 = scalar_lea.vmem [#allocation2], 6
    %114 = vst.msk [vmem:[%s113] sm:$0xc] %vm111, %v110
    %s116 = sshllo.u32 0, 2
    %v118 = vld [vmem:[#allocation2] sm:%s116]
    %s119 = sshllo.u32 0, 2
    %120 = vst [vmem:[%s1] sm:%s119] %v118
    %s121 = scalar_lea.vmem [#allocation2], 8
    %v122 = vld [vmem:[%s121] sm:%s116]
    %s123 = sshllo.u32 0, 2
    %s124 = scalar_lea.vmem %s1, 2
    %125 = vst [vmem:[%s124] sm:%s123] %v122
    %126 = vsyncpa [#allocation1], 1

// kernel: pix2pix_subnet_forward.1
$region0: #{pix2pix_subnet_forward.1}
  #allocation0 [shape = 'u32[]', space=smem, size = 0x4, offset = 0x4, fixed_abs, tag = 'smem constant byte address 0x4 - core index']
  #allocation1 [shape = 'u32[144,128]{1,0:T(1,128)}', space=vmem, size = 0x12000, scoped, tag = 'internal scratch']
  %s0 = inlined_call_operand.hbm [shape: f32[2,256,128], index: 0, kind: input, shape index: {}]
  %s1 = inlined_call_operand.hbm [shape: f32[2,256,128], index: 1, kind: input, shape index: {}]
  %s2 = inlined_call_operand.hbm [shape: f32[2,2,256], index: 2, kind: input, shape index: {}]
  %s3 = inlined_call_operand.hbm [shape: f32[2,2,256], index: 3, kind: output, shape index: {0}]
  %s4 = inlined_call_operand.hbm [shape: f32[2,256,256], index: 4, kind: output, shape index: {1}]
  %s5 = inlined_call_operand.hbm [shape: f32[2,256,256], index: 5, kind: output, shape index: {2}]
  %s6 = inlined_call_operand.hbm [shape: s32[2,256,1], index: 6, kind: output, shape index: {3}]
  %7 = xla_tuple %s3, %s4, %s5, %s6
  %s8 = sld [smem:[#allocation0]]
  $region81: #{pix2pix_subnet_forward.1} parent=0
    _
  %s10 = ssub.s32 1, %s8
  %s11 = scalar_select 0, %s10, %s8
  $region1: #{pix2pix_subnet_forward.1} parent=0
    #allocation2 [shape = 'u8[262144]{0}', space=vmem, size = 0x40000, scoped, tag = 'input window, operand 0']
    #allocation3 [shape = 's32[2]{0}', space=sflag, size = 0x8, scoped, tag = 'scoped memory for pix2pix_subnet_forward.1']
    #allocation4 [shape = 's32[2]{0}', space=sflag, size = 0x8, scoped, tag = 'scoped memory for pix2pix_subnet_forward.1']
    #allocation5 [shape = 'u8[262144]{0}', space=vmem, size = 0x40000, scoped, tag = 'input window, operand 1']
    #allocation6 [shape = 's32[2]{0}', space=sflag, size = 0x8, scoped, tag = 'scoped memory for pix2pix_subnet_forward.1']
    #allocation7 [shape = 'u8[4096]{0}', space=vmem, size = 0x1000, scoped, tag = 'input window, operand 2']
    #allocation8 [shape = 'u8[4096]{0}', space=vmem, size = 0x1000, scoped, tag = 'output window, operand 0']
    #allocation9 [shape = 'u8[524288]{0}', space=vmem, size = 0x80000, scoped, tag = 'output window, operand 1']
    #allocation10 [shape = 's32[2]{0}', space=sflag, size = 0x8, scoped, tag = 'scoped memory for pix2pix_subnet_forward.1']
    #allocation11 [shape = 'u8[524288]{0}', space=vmem, size = 0x80000, scoped, tag = 'output window, operand 2']
    #allocation12 [shape = 'u8[262144]{0}', space=vmem, size = 0x40000, scoped, tag = 'output window, operand 3']
    #allocation13 [shape = 's32[2]{0}', space=sflag, size = 0x8, scoped, tag = 'scoped memory for pix2pix_subnet_forward.1']
    %12 = vsyncpa [#allocation3], 0
    %s13 = scalar_lea.sflag [#allocation3], 1
    %14 = vsyncpa %s13, 0
    %15 = vsyncpa [#allocation6], 0
    %s16 = scalar_lea.sflag [#allocation6], 1
    %17 = vsyncpa %s16, 0
    %18 = vsyncpa [#allocation4], 0
    %s19 = scalar_lea.sflag [#allocation4], 1
    %20 = vsyncpa %s19, 0
    %21 = vsyncpa [#allocation10], 0
    %s22 = scalar_lea.sflag [#allocation10], 1
    %23 = vsyncpa %s22, 0
    %24 = vsyncpa [#allocation13], 0
    %s25 = scalar_lea.sflag [#allocation13], 1
    %26 = vsyncpa %s25, 0
    loop: start=0, step=1, limit=4
    $region2: #{pix2pix_subnet_forward.1} parent=1 // loop_pre_header
      _
    $region3: #{pix2pix_subnet_forward.1} parent=1 // loop_header
      %s28 = sphi 0, %s32
      %p29 = scmp.ge.s32.totalorder %s28, 4
      %s35 = sphi 0, %s47
      %s36 = sphi 0, %s43
      %s37 = sphi 0, %s35
      %s38 = sphi 0, %s36
      %s39 = sphi 0, %s37
      %s40 = sphi 0, %s38
      %s52 = sphi 0, %s54
      %s55 = sphi 0, %s52
      %s56 = sphi 0, %s55
      %s72 = sphi 0, %s56
      %s78 = sphi 0, %s80
      %s81 = sphi 0, %s78
      %s82 = sphi 0, %s81
      %s98 = sphi 0, %s82
      %s104 = sphi 0, %s106
      %s107 = sphi 0, %s104
      %s108 = sphi 0, %s107
      %s124 = sphi 0, %s108
      %s130 = sphi 0, %s132
      %s133 = sphi 0, %s130
      %s134 = sphi 0, %s133
      %s150 = sphi 0, %s134
      %s158 = sphi 0, %s160
      %s161 = sphi 0, %s158
      %s162 = sphi 0, %s161
      %s178 = sphi 0, %s162
      %s186 = sphi 0, %s188
      %s189 = sphi 0, %s186
      %s190 = sphi 0, %s189
      %s206 = sphi 0, %s190
      %s214 = sphi 0, %s216
      %s217 = sphi 0, %s214
      %s218 = sphi 0, %s217
      %s234 = sphi 0, %s218
    $region4: #{pix2pix_subnet_forward.1} parent=1 // loop_header_branch
      %31 = sbr.rel (%p29) target = $region8
    $region5: #{pix2pix_subnet_forward.1} parent=1 // loop_body
      %s33 = ssub.s32 %s28, 1
      %s34 = ssub.s32 %s28, 2
      %s41 = sadd.s32 1, %s36
      %p42 = scmp.ge.s32.totalorder %s41, 1
      %s43 = scalar_select %p42, 0, %s41
      %s44 = sadd.s32 1, %s35
      %s45 = scalar_select %p42, %s44, %s35
      %p46 = scmp.ge.s32.totalorder %s45, 2
      %s47 = scalar_select %p46, 0, %s45
      %s48 = ssub.s32 %s35, %s47
      %s49 = ssub.s32 %s36, %s43
      %s50 = sor.u32 %s48, %s49
      %p51 = scmp.eq.s32.totalorder %s50, 0
      %s53 = sadd.s32 %s52, 1
      %s54 = scalar_select %p51, %s52, %s53
      %p57 = pneg %p51
      %p58 = scmp.eq.s32.totalorder %s28, 1
      %p59 = por %p57, %p58
      %p60 = scmp.ne.s32.totalorder %s52, %s55
      %p61 = scmp.eq.s32.totalorder %s28, 0
      %p62 = por %p60, %p61
      %p63 = scmp.ne.s32.totalorder %s52, %s55
      %p64 = scmp.eq.s32.totalorder %s33, 1
      %p65 = por %p63, %p64
      %p66 = scmp.ne.s32.totalorder %s55, %s56
      %p67 = scmp.eq.s32.totalorder %s33, 0
      %p68 = por %p66, %p67
      %p69 = scmp.ne.s32.totalorder %s55, %s56
      %p70 = scmp.eq.s32.totalorder %s34, 1
      %p71 = por %p69, %p70
      %p73 = scmp.ne.s32.totalorder %s56, %s72
      %p74 = scmp.eq.s32.totalorder %s34, 0
      %p75 = por %p73, %p74
      %s76 = ssub.s32 %s35, %s47
      %p77 = scmp.eq.s32.totalorder %s76, 0
      %s79 = sadd.s32 %s78, 1
      %s80 = scalar_select %p77, %s78, %s79
      %p83 = pneg %p77
      %p84 = scmp.eq.s32.totalorder %s28, 1
      %p85 = por %p83, %p84
      %p86 = scmp.ne.s32.totalorder %s78, %s81
      %p87 = scmp.eq.s32.totalorder %s28, 0
      %p88 = por %p86, %p87
      %p89 = scmp.ne.s32.totalorder %s78, %s81
      %p90 = scmp.eq.s32.totalorder %s33, 1
      %p91 = por %p89, %p90
      %p92 = scmp.ne.s32.totalorder %s81, %s82
      %p93 = scmp.eq.s32.totalorder %s33, 0
      %p94 = por %p92, %p93
      %p95 = scmp.ne.s32.totalorder %s81, %s82
      %p96 = scmp.eq.s32.totalorder %s34, 1
      %p97 = por %p95, %p96
      %p99 = scmp.ne.s32.totalorder %s82, %s98
      %p100 = scmp.eq.s32.totalorder %s34, 0
      %p101 = por %p99, %p100
      %s102 = ssub.s32 %s35, %s47
      %p103 = scmp.eq.s32.totalorder %s102, 0
      %s105 = sadd.s32 %s104, 1
      %s106 = scalar_select %p103, %s104, %s105
      %p109 = pneg %p103
      %p110 = scmp.eq.s32.totalorder %s28, 1
      %p111 = por %p109, %p110
      %p112 = scmp.ne.s32.totalorder %s104, %s107
      %p113 = scmp.eq.s32.totalorder %s28, 0
      %p114 = por %p112, %p113
      %p115 = scmp.ne.s32.totalorder %s104, %s107
      %p116 = scmp.eq.s32.totalorder %s33, 1
      %p117 = por %p115, %p116
      %p118 = scmp.ne.s32.totalorder %s107, %s108
      %p119 = scmp.eq.s32.totalorder %s33, 0
      %p120 = por %p118, %p119
      %p121 = scmp.ne.s32.totalorder %s107, %s108
      %p122 = scmp.eq.s32.totalorder %s34, 1
      %p123 = por %p121, %p122
      %p125 = scmp.ne.s32.totalorder %s108, %s124
      %p126 = scmp.eq.s32.totalorder %s34, 0
      %p127 = por %p125, %p126
      %s128 = ssub.s32 %s35, %s47
      %p129 = scmp.eq.s32.totalorder %s128, 0
      %s131 = sadd.s32 %s130, 1
      %s132 = scalar_select %p129, %s130, %s131
      %p135 = pneg %p129
      %p136 = scmp.eq.s32.totalorder %s28, 1
      %p137 = por %p135, %p136
      %p138 = scmp.ne.s32.totalorder %s130, %s133
      %p139 = scmp.eq.s32.totalorder %s28, 0
      %p140 = por %p138, %p139
      %p141 = scmp.ne.s32.totalorder %s130, %s133
      %p142 = scmp.eq.s32.totalorder %s33, 1
      %p143 = por %p141, %p142
      %p144 = scmp.ne.s32.totalorder %s133, %s134
      %p145 = scmp.eq.s32.totalorder %s33, 0
      %p146 = por %p144, %p145
      %p147 = scmp.ne.s32.totalorder %s133, %s134
      %p148 = scmp.eq.s32.totalorder %s34, 1
      %p149 = por %p147, %p148
      %p151 = scmp.ne.s32.totalorder %s134, %s150
      %p152 = scmp.eq.s32.totalorder %s34, 0
      %p153 = por %p151, %p152
      %s154 = ssub.s32 %s35, %s47
      %s155 = ssub.s32 %s36, %s43
      %s156 = sor.u32 %s154, %s155
      %p157 = scmp.eq.s32.totalorder %s156, 0
      %s159 = sadd.s32 %s158, 1
      %s160 = scalar_select %p157, %s158, %s159
      %p163 = pneg %p157
      %p164 = scmp.eq.s32.totalorder %s28, 1
      %p165 = por %p163, %p164
      %p166 = scmp.ne.s32.totalorder %s158, %s161
      %p167 = scmp.eq.s32.totalorder %s28, 0
      %p168 = por %p166, %p167
      %p169 = scmp.ne.s32.totalorder %s158, %s161
      %p170 = scmp.eq.s32.totalorder %s33, 1
      %p171 = por %p169, %p170
      %p172 = scmp.ne.s32.totalorder %s161, %s162
      %p173 = scmp.eq.s32.totalorder %s33, 0
      %p174 = por %p172, %p173
      %p175 = scmp.ne.s32.totalorder %s161, %s162
      %p176 = scmp.eq.s32.totalorder %s34, 1
      %p177 = por %p175, %p176
      %p179 = scmp.ne.s32.totalorder %s162, %s178
      %p180 = scmp.eq.s32.totalorder %s34, 0
      %p181 = por %p179, %p180
      %s182 = ssub.s32 %s35, %s47
      %s183 = ssub.s32 %s36, %s43
      %s184 = sor.u32 %s182, %s183
      %p185 = scmp.eq.s32.totalorder %s184, 0
      %s187 = sadd.s32 %s186, 1
      %s188 = scalar_select %p185, %s186, %s187
      %p191 = pneg %p185
      %p192 = scmp.eq.s32.totalorder %s28, 1
      %p193 = por %p191, %p192
      %p194 = scmp.ne.s32.totalorder %s186, %s189
      %p195 = scmp.eq.s32.totalorder %s28, 0
      %p196 = por %p194, %p195
      %p197 = scmp.ne.s32.totalorder %s186, %s189
      %p198 = scmp.eq.s32.totalorder %s33, 1
      %p199 = por %p197, %p198
      %p200 = scmp.ne.s32.totalorder %s189, %s190
      %p201 = scmp.eq.s32.totalorder %s33, 0
      %p202 = por %p200, %p201
      %p203 = scmp.ne.s32.totalorder %s189, %s190
      %p204 = scmp.eq.s32.totalorder %s34, 1
      %p205 = por %p203, %p204
      %p207 = scmp.ne.s32.totalorder %s190, %s206
      %p208 = scmp.eq.s32.totalorder %s34, 0
      %p209 = por %p207, %p208
      %s210 = ssub.s32 %s35, %s47
      %s211 = ssub.s32 %s36, %s43
      %s212 = sor.u32 %s210, %s211
      %p213 = scmp.eq.s32.totalorder %s212, 0
      %s215 = sadd.s32 %s214, 1
      %s216 = scalar_select %p213, %s214, %s215
      %p219 = pneg %p213
      %p220 = scmp.eq.s32.totalorder %s28, 1
      %p221 = por %p219, %p220
      %p222 = scmp.ne.s32.totalorder %s214, %s217
      %p223 = scmp.eq.s32.totalorder %s28, 0
      %p224 = por %p222, %p223
      %p225 = scmp.ne.s32.totalorder %s214, %s217
      %p226 = scmp.eq.s32.totalorder %s33, 1
      %p227 = por %p225, %p226
      %p228 = scmp.ne.s32.totalorder %s217, %s218
      %p229 = scmp.eq.s32.totalorder %s33, 0
      %p230 = por %p228, %p229
      %p231 = scmp.ne.s32.totalorder %s217, %s218
      %p232 = scmp.eq.s32.totalorder %s34, 1
      %p233 = por %p231, %p232
      %p235 = scmp.ne.s32.totalorder %s218, %s234
      %p236 = scmp.eq.s32.totalorder %s34, 0
      %p237 = por %p235, %p236
      %p238 = scmp.le.s32.totalorder 1, %s28
      %p239 = scmp.lt.s32.totalorder %s28, 3
      %p240 = pnand %p238, %p239
      %p241 = pneg %p240
      // Predicated region
      $region9: #{pix2pix_subnet_forward.1} parent=5 // pred_check
        _
      $region10: #{pix2pix_subnet_forward.1} parent=5 // pred_check_branch
        %243 = sbr.rel (%p240) target = $region12
      $region11: #{pix2pix_subnet_forward.1} parent=5 // pred_region
        %s244 = ssub.s32 %s28, 1
      $region12: #{pix2pix_subnet_forward.1} parent=5 // pred_fallthru
        _
      %p245 = scmp.lt.s32.totalorder %s28, 2
      // Predicated region
      $region13: #{pix2pix_subnet_forward.1} parent=5 // pred_check
        %p246 = pneg %p245
      $region14: #{pix2pix_subnet_forward.1} parent=5 // pred_check_branch
        %248 = sbr.rel (%p246) target = $region16
      $region15: #{pix2pix_subnet_forward.1} parent=5 // pred_region
        // Predicated region
        $region17: #{pix2pix_subnet_forward.1} parent=15 // pred_check
          %p249 = pneg %p62
        $region18: #{pix2pix_subnet_forward.1} parent=15 // pred_check_branch
          %251 = sbr.rel (%p249) target = $region20
        $region19: #{pix2pix_subnet_forward.1} parent=15 // pred_region
          %s252 = sand.u32 %s52, 1
          %s253 = scalar_lea.sflag [#allocation3], %s252
          %s254 = sand.u32 %s52, 1
          %s255 = smul.addr %s254, 256
          %s256 = scalar_lea.vmem [#allocation2], %s255
          %s257 = smul.u32 32, %s36
          %s259 = ssub.s32 4096, 4096
          %260 = vsyncadd %s253, %s259
          %s261 = smul.addr %s35, 32
          %s262 = sadd.s32 %s257, %s261
          %s263 = smul.addr %s262, 128
          %s264 = scalar_lea.hbm %s0, %s263
          %s265 = sshll.u32 %s256, 4
          %s266 = int_to_ptr.vmem [resolvable:$true] %s265
          %271 = dma.hbm_to_vmem [thread:$0]  %s264, 4096, %s266, %s253, 128, 128, 8
        $region20: #{pix2pix_subnet_forward.1} parent=15 // pred_fallthru
          _
        // Predicated region
        $region21: #{pix2pix_subnet_forward.1} parent=15 // pred_check
          %p272 = pneg %p88
        $region22: #{pix2pix_subnet_forward.1} parent=15 // pred_check_branch
          %274 = sbr.rel (%p272) target = $region24
        $region23: #{pix2pix_subnet_forward.1} parent=15 // pred_region
          %s275 = sand.u32 %s28, 1
          %s276 = scalar_lea.sflag [#allocation6], %s275
          %s277 = sand.u32 %s78, 1
          %s278 = smul.addr %s277, 256
          %s279 = scalar_lea.vmem [#allocation5], %s278
          %s281 = ssub.s32 4096, 4096
          %282 = vsyncadd %s276, %s281
          %s283 = smul.addr %s35, 32
          %s284 = smul.addr %s283, 128
          %s285 = scalar_lea.hbm %s1, %s284
          %s286 = sshll.u32 %s279, 4
          %s287 = int_to_ptr.vmem [resolvable:$true] %s286
          %292 = dma.hbm_to_vmem [thread:$0]  %s285, 4096, %s287, %s276, 128, 128, 8
        $region24: #{pix2pix_subnet_forward.1} parent=15 // pred_fallthru
          _
        // Predicated region
        $region25: #{pix2pix_subnet_forward.1} parent=15 // pred_check
          %p293 = pneg %p114
        $region26: #{pix2pix_subnet_forward.1} parent=15 // pred_check_branch
          %295 = sbr.rel (%p293) target = $region28
        $region27: #{pix2pix_subnet_forward.1} parent=15 // pred_region
          %s296 = sand.u32 %s28, 1
          %s297 = scalar_lea.sflag [#allocation6], %s296
          %s298 = sand.u32 %s104, 1
          %s299 = smul.addr %s298, 4
          %s300 = scalar_lea.vmem [#allocation7], %s299
          %s302 = ssub.s32 64, 64
          %303 = vsyncadd %s297, %s302
          %s304 = smul.addr %s35, 2
          %s305 = smul.addr %s304, 32
          %s306 = scalar_lea.hbm %s2, %s305
          %s308 = sshll.u32 %s300, 4
          %s309 = int_to_ptr.vmem [resolvable:$true] %s308
          %311 = dma.hbm_to_vmem [thread:$0]  %s306, 64, %s309, %s297
        $region28: #{pix2pix_subnet_forward.1} parent=15 // pred_fallthru
          _
      $region16: #{pix2pix_subnet_forward.1} parent=5 // pred_fallthru
        _
      %p312 = scmp.le.s32.totalorder 1, %s28
      %p313 = scmp.lt.s32.totalorder %s28, 3
      %p314 = pnand %p312, %p313
      %p315 = pneg %p314
      // Predicated region
      $region29: #{pix2pix_subnet_forward.1} parent=5 // pred_check
        _
      $region30: #{pix2pix_subnet_forward.1} parent=5 // pred_check_branch
        %317 = sbr.rel (%p314) target = $region32
      $region31: #{pix2pix_subnet_forward.1} parent=5 // pred_region
        %s318 = ssub.s32 %s28, 1
        %s319 = sand.u32 %s55, 1
        %s320 = scalar_lea.sflag [#allocation3], %s319
        %s321 = sand.u32 %s55, 1
        %s322 = smul.addr %s321, 256
        %s323 = scalar_lea.vmem [#allocation2], %s322
        // Predicated region
        $region33: #{pix2pix_subnet_forward.1} parent=31 // pred_check
          %p324 = pneg %p68
        $region34: #{pix2pix_subnet_forward.1} parent=31 // pred_check_branch
          %326 = sbr.rel (%p324) target = $region36
        $region35: #{pix2pix_subnet_forward.1} parent=31 // pred_region
          %327 = dma.done %s320, 4096
        $region36: #{pix2pix_subnet_forward.1} parent=31 // pred_fallthru
          _
        %s328 = sand.u32 %s33, 1
        %s329 = scalar_lea.sflag [#allocation6], %s328
        %s330 = sand.u32 %s81, 1
        %s331 = smul.addr %s330, 256
        %s332 = scalar_lea.vmem [#allocation5], %s331
        // Predicated region
        $region37: #{pix2pix_subnet_forward.1} parent=31 // pred_check
          %p333 = pneg %p94
        $region38: #{pix2pix_subnet_forward.1} parent=31 // pred_check_branch
          %335 = sbr.rel (%p333) target = $region40
        $region39: #{pix2pix_subnet_forward.1} parent=31 // pred_region
          %336 = dma.done %s329, 4096
        $region40: #{pix2pix_subnet_forward.1} parent=31 // pred_fallthru
          _
        %s337 = sand.u32 %s33, 1
        %s338 = scalar_lea.sflag [#allocation6], %s337
        %s339 = sand.u32 %s107, 1
        %s340 = smul.addr %s339, 4
        %s341 = scalar_lea.vmem [#allocation7], %s340
        // Predicated region
        $region41: #{pix2pix_subnet_forward.1} parent=31 // pred_check
          %p342 = pneg %p120
        $region42: #{pix2pix_subnet_forward.1} parent=31 // pred_check_branch
          %344 = sbr.rel (%p342) target = $region44
        $region43: #{pix2pix_subnet_forward.1} parent=31 // pred_region
          %345 = dma.done %s338, 64
        $region44: #{pix2pix_subnet_forward.1} parent=31 // pred_fallthru
          _
        %s346 = sand.u32 %s55, 1
        %s347 = scalar_lea.sflag [#allocation3], %s346
        %s348 = sand.u32 %s55, 1
        %s349 = smul.addr %s348, 256
        %s350 = scalar_lea.vmem [#allocation2], %s349
        %p351 = pneg %p68
        %p352 = pneg %p65
        %s353 = sand.u32 %s33, 1
        %s354 = scalar_lea.sflag [#allocation6], %s353
        %s355 = sand.u32 %s81, 1
        %s356 = smul.addr %s355, 256
        %s357 = scalar_lea.vmem [#allocation5], %s356
        %p358 = pneg %p94
        %p359 = pneg %p91
        %s360 = sand.u32 %s33, 1
        %s361 = scalar_lea.sflag [#allocation6], %s360
        %s362 = sand.u32 %s107, 1
        %s363 = smul.addr %s362, 4
        %s364 = scalar_lea.vmem [#allocation7], %s363
        %p365 = pneg %p120
        %p366 = pneg %p117
        %p367 = pneg %p146
        %p368 = pneg %p143
        %s369 = sand.u32 %s133, 1
        %s370 = scalar_lea.sflag [#allocation4], %s369
        %s371 = sand.u32 %s133, 1
        %s372 = smul.addr %s371, 4
        %s373 = scalar_lea.vmem [#allocation8], %s372
        %p374 = pneg %p174
        %p375 = pneg %p171
        %s376 = sand.u32 %s33, 1
        %s377 = scalar_lea.sflag [#allocation10], %s376
        %s378 = sand.u32 %s161, 1
        %s379 = smul.addr %s378, 512
        %s380 = scalar_lea.vmem [#allocation9], %s379
        %p381 = pneg %p202
        %p382 = pneg %p199
        %s383 = sand.u32 %s33, 1
        %s384 = scalar_lea.sflag [#allocation10], %s383
        %s385 = sand.u32 %s189, 1
        %s386 = smul.addr %s385, 512
        %s387 = scalar_lea.vmem [#allocation11], %s386
        %p388 = pneg %p230
        %p389 = pneg %p227
        %s390 = sand.u32 %s217, 1
        %s391 = scalar_lea.sflag [#allocation13], %s390
        %s392 = sand.u32 %s217, 1
        %s393 = smul.addr %s392, 256
        %s394 = scalar_lea.vmem [#allocation12], %s393
        %s395 = smul.u32 32, %s38
        %s396 = smul.u32 32, %s38
        %s397 = smul.u32 2, %s38
        %s398 = smul.u32 32, %s38
        %v399 = vld [vmem:[%s323] sm:$0xff]
        %v400 = vld [vmem:[%s323 + $0x8] sm:$0xff]
        %v401 = vld [vmem:[%s323 + $0x10] sm:$0xff]
        %v402 = vld [vmem:[%s323 + $0x18] sm:$0xff]
        %v403 = vld [vmem:[%s323 + $0x20] sm:$0xff]
        %v404 = vld [vmem:[%s323 + $0x28] sm:$0xff]
        %v405 = vld [vmem:[%s323 + $0x30] sm:$0xff]
        %v406 = vld [vmem:[%s323 + $0x38] sm:$0xff]
        %v407 = vld [vmem:[%s323 + $0x40] sm:$0xff]
        %v408 = vld [vmem:[%s323 + $0x48] sm:$0xff]
        %v409 = vld [vmem:[%s323 + $0x50] sm:$0xff]
        %v410 = vld [vmem:[%s323 + $0x58] sm:$0xff]
        %v411 = vld [vmem:[%s323 + $0x60] sm:$0xff]
        %v412 = vld [vmem:[%s323 + $0x68] sm:$0xff]
        %v413 = vld [vmem:[%s323 + $0x70] sm:$0xff]
        %v414 = vld [vmem:[%s323 + $0x78] sm:$0xff]
        %v415 = vld [vmem:[%s323 + $0x80] sm:$0xff]
        %v416 = vld [vmem:[%s323 + $0x88] sm:$0xff]
        %v417 = vld [vmem:[%s323 + $0x90] sm:$0xff]
        %v418 = vld [vmem:[%s323 + $0x98] sm:$0xff]
        %v419 = vld [vmem:[%s323 + $0xa0] sm:$0xff]
        %v420 = vld [vmem:[%s323 + $0xa8] sm:$0xff]
        %v421 = vld [vmem:[%s323 + $0xb0] sm:$0xff]
        %v422 = vld [vmem:[%s323 + $0xb8] sm:$0xff]
        %v423 = vld [vmem:[%s323 + $0xc0] sm:$0xff]
        %v424 = vld [vmem:[%s323 + $0xc8] sm:$0xff]
        %v425 = vld [vmem:[%s323 + $0xd0] sm:$0xff]
        %v426 = vld [vmem:[%s323 + $0xd8] sm:$0xff]
        %v427 = vld [vmem:[%s323 + $0xe0] sm:$0xff]
        %v428 = vld [vmem:[%s323 + $0xe8] sm:$0xff]
        %v429 = vld [vmem:[%s323 + $0xf0] sm:$0xff]
        %v430 = vld [vmem:[%s323 + $0xf8] sm:$0xff]
        %v431 = vld [vmem:[%s332] sm:$0xff]
        %v432 = vld [vmem:[%s332 + $0x8] sm:$0xff]
        %v433 = vld [vmem:[%s332 + $0x10] sm:$0xff]
        %v434 = vld [vmem:[%s332 + $0x18] sm:$0xff]
        %v435 = vld [vmem:[%s332 + $0x20] sm:$0xff]
        %v436 = vld [vmem:[%s332 + $0x28] sm:$0xff]
        %v437 = vld [vmem:[%s332 + $0x30] sm:$0xff]
        %v438 = vld [vmem:[%s332 + $0x38] sm:$0xff]
        %v439 = vld [vmem:[%s332 + $0x40] sm:$0xff]
        %v440 = vld [vmem:[%s332 + $0x48] sm:$0xff]
        %v441 = vld [vmem:[%s332 + $0x50] sm:$0xff]
        %v442 = vld [vmem:[%s332 + $0x58] sm:$0xff]
        %v443 = vld [vmem:[%s332 + $0x60] sm:$0xff]
        %v444 = vld [vmem:[%s332 + $0x68] sm:$0xff]
        %v445 = vld [vmem:[%s332 + $0x70] sm:$0xff]
        %v446 = vld [vmem:[%s332 + $0x78] sm:$0xff]
        %v447 = vld [vmem:[%s332 + $0x80] sm:$0xff]
        %v448 = vld [vmem:[%s332 + $0x88] sm:$0xff]
        %v449 = vld [vmem:[%s332 + $0x90] sm:$0xff]
        %v450 = vld [vmem:[%s332 + $0x98] sm:$0xff]
        %v451 = vld [vmem:[%s332 + $0xa0] sm:$0xff]
        %v452 = vld [vmem:[%s332 + $0xa8] sm:$0xff]
        %v453 = vld [vmem:[%s332 + $0xb0] sm:$0xff]
        %v454 = vld [vmem:[%s332 + $0xb8] sm:$0xff]
        %v455 = vld [vmem:[%s332 + $0xc0] sm:$0xff]
        %v456 = vld [vmem:[%s332 + $0xc8] sm:$0xff]
        %v457 = vld [vmem:[%s332 + $0xd0] sm:$0xff]
        %v458 = vld [vmem:[%s332 + $0xd8] sm:$0xff]
        %v459 = vld [vmem:[%s332 + $0xe0] sm:$0xff]
        %v460 = vld [vmem:[%s332 + $0xe8] sm:$0xff]
        %v461 = vld [vmem:[%s332 + $0xf0] sm:$0xff]
        %v462 = vld [vmem:[%s332 + $0xf8] sm:$0xff]
        %v463 = vld [vmem:[%s341] sm:$0xf]
        %464 = vmatprep.subr.mxu0 0.0
        %465 = vmatpush1.xpose.msra.mxu0 %v431
        %466 = vmatprep.subr.mxu0 0.0
        %467 = vmatpush1.xpose.msra.mxu0 %v432
        %468 = vmatprep.subr.mxu0 0.0
        %469 = vmatpush1.xpose.msra.mxu0 %v433
        %470 = vmatprep.subr.mxu0 0.0
        %471 = vmatpush1.xpose.msra.mxu0 %v434
        %472 = vmatprep.subr.mxu0 0.0
        %473 = vmatpush1.xpose.msra.mxu0 %v435
        %474 = vmatprep.subr.mxu0 0.0
        %475 = vmatpush1.xpose.msra.mxu0 %v436
        %476 = vmatprep.subr.mxu0 0.0
        %477 = vmatpush1.xpose.msra.mxu0 %v437
        %478 = vmatprep.subr.mxu0 0.0
        %479 = vmatpush1.xpose.msra.mxu0 %v438
        %480 = vmatprep.subr.mxu0 0.0
        %481 = vmatpush1.xpose.msra.mxu0 %v439
        %482 = vmatprep.subr.mxu0 0.0
        %483 = vmatpush1.xpose.msra.mxu0 %v440
        %484 = vmatprep.subr.mxu0 0.0
        %485 = vmatpush1.xpose.msra.mxu0 %v441
        %486 = vmatprep.subr.mxu0 0.0
        %487 = vmatpush1.xpose.msra.mxu0 %v442
        %488 = vmatprep.subr.mxu0 0.0
        %489 = vmatpush1.xpose.msra.mxu0 %v443
        %490 = vmatprep.subr.mxu0 0.0
        %491 = vmatpush1.xpose.msra.mxu0 %v444
        %492 = vmatprep.subr.mxu0 0.0
        %493 = vmatpush1.xpose.msra.mxu0 %v445
        %494 = vmatprep.subr.mxu0 0.0
        %495 = vmatpush1.xpose.msra.mxu0 %v446
        %496 = vmatprep.subr.mxu0 0.0
        %497 = vmatpush1.xpose.msra.mxu0 %v447
        %498 = vmatprep.subr.mxu0 0.0
        %499 = vmatpush1.xpose.msra.mxu0 %v448
        %500 = vmatprep.subr.mxu0 0.0
        %501 = vmatpush1.xpose.msra.mxu0 %v449
        %502 = vmatprep.subr.mxu0 0.0
        %503 = vmatpush1.xpose.msra.mxu0 %v450
        %504 = vmatprep.subr.mxu0 0.0
        %505 = vmatpush1.xpose.msra.mxu0 %v451
        %506 = vmatprep.subr.mxu0 0.0
        %507 = vmatpush1.xpose.msra.mxu0 %v452
        %508 = vmatprep.subr.mxu0 0.0
        %509 = vmatpush1.xpose.msra.mxu0 %v453
        %510 = vmatprep.subr.mxu0 0.0
        %511 = vmatpush1.xpose.msra.mxu0 %v454
        %512 = vmatprep.subr.mxu0 0.0
        %513 = vmatpush1.xpose.msra.mxu0 %v455
        %514 = vmatprep.subr.mxu0 0.0
        %515 = vmatpush1.xpose.msra.mxu0 %v456
        %516 = vmatprep.subr.mxu0 0.0
        %517 = vmatpush1.xpose.msra.mxu0 %v457
        %518 = vmatprep.subr.mxu0 0.0
        %519 = vmatpush1.xpose.msra.mxu0 %v458
        %520 = vmatprep.subr.mxu0 0.0
        %521 = vmatpush1.xpose.msra.mxu0 %v459
        %522 = vmatprep.subr.mxu0 0.0
        %523 = vmatpush1.xpose.msra.mxu0 %v460
        %524 = vmatprep.subr.mxu0 0.0
        %525 = vmatpush1.xpose.msra.mxu0 %v461
        %526 = vmatprep.subr.mxu0 0.0
        %527 = vmatpush1.xpose.msra.mxu0 %v462
        %528 = vmatprep.mubr.f32.mxu0 0.0
        %529 = vmatmul.mubr.f32.gmra.mrb[0].mxu0 %v399
        %v530 = vpop.f32.mrb[0].mxu0
        %v531 = vadd.f32 0.0, %v530
        %v532 = vpop.f32.mrb[0].mxu0
        %v533 = vadd.f32 0.0, %v532
        %534 = vmatprep.mubr.f32.mxu0 0.0
        %535 = vmatmul.mubr.f32.gmra.mrb[0].mxu0 %v400
        %v536 = vpop.f32.mrb[0].mxu0
        %v537 = vadd.f32 0.0, %v536
        %v538 = vpop.f32.mrb[0].mxu0
        %v539 = vadd.f32 0.0, %v538
        %540 = vmatprep.mubr.f32.mxu0 0.0
        %541 = vmatmul.mubr.f32.gmra.mrb[0].mxu0 %v401
        %v542 = vpop.f32.mrb[0].mxu0
        %v543 = vadd.f32 0.0, %v542
        %v544 = vpop.f32.mrb[0].mxu0
        %v545 = vadd.f32 0.0, %v544
        %546 = vmatprep.mubr.f32.mxu0 0.0
        %547 = vmatmul.mubr.f32.gmra.mrb[0].mxu0 %v402
        %v548 = vpop.f32.mrb[0].mxu0
        %v549 = vadd.f32 0.0, %v548
        %v550 = vpop.f32.mrb[0].mxu0
        %v551 = vadd.f32 0.0, %v550
        %552 = vmatprep.mubr.f32.mxu0 0.0
        %553 = vmatmul.mubr.f32.gmra.mrb[0].mxu0 %v403
        %v554 = vpop.f32.mrb[0].mxu0
        %v555 = vadd.f32 0.0, %v554
        %v556 = vpop.f32.mrb[0].mxu0
        %v557 = vadd.f32 0.0, %v556
        %558 = vmatprep.mubr.f32.mxu0 0.0
        %559 = vmatmul.mubr.f32.gmra.mrb[0].mxu0 %v404
        %v560 = vpop.f32.mrb[0].mxu0
        %v561 = vadd.f32 0.0, %v560
        %v562 = vpop.f32.mrb[0].mxu0
        %v563 = vadd.f32 0.0, %v562
        %564 = vmatprep.mubr.f32.mxu0 0.0
        %565 = vmatmul.mubr.f32.gmra.mrb[0].mxu0 %v405
        %v566 = vpop.f32.mrb[0].mxu0
        %v567 = vadd.f32 0.0, %v566
        %v568 = vpop.f32.mrb[0].mxu0
        %v569 = vadd.f32 0.0, %v568
        %570 = vmatprep.mubr.f32.mxu0 0.0
        %571 = vmatmul.mubr.f32.gmra.mrb[0].mxu0 %v406
        %v572 = vpop.f32.mrb[0].mxu0
        %v573 = vadd.f32 0.0, %v572
        %v574 = vpop.f32.mrb[0].mxu0
        %v575 = vadd.f32 0.0, %v574
        %576 = vmatprep.mubr.f32.mxu0 0.0
        %577 = vmatmul.mubr.f32.gmra.mrb[0].mxu0 %v407
        %v578 = vpop.f32.mrb[0].mxu0
        %v579 = vadd.f32 0.0, %v578
        %v580 = vpop.f32.mrb[0].mxu0
        %v581 = vadd.f32 0.0, %v580
        %582 = vmatprep.mubr.f32.mxu0 0.0
        %583 = vmatmul.mubr.f32.gmra.mrb[0].mxu0 %v408
        %v584 = vpop.f32.mrb[0].mxu0
        %v585 = vadd.f32 0.0, %v584
        %v586 = vpop.f32.mrb[0].mxu0
        %v587 = vadd.f32 0.0, %v586
        %588 = vmatprep.mubr.f32.mxu0 0.0
        %589 = vmatmul.mubr.f32.gmra.mrb[0].mxu0 %v409
        %v590 = vpop.f32.mrb[0].mxu0
        %v591 = vadd.f32 0.0, %v590
        %v592 = vpop.f32.mrb[0].mxu0
        %v593 = vadd.f32 0.0, %v592
        %594 = vmatprep.mubr.f32.mxu0 0.0
        %595 = vmatmul.mubr.f32.gmra.mrb[0].mxu0 %v410
        %v596 = vpop.f32.mrb[0].mxu0
        %v597 = vadd.f32 0.0, %v596
        %v598 = vpop.f32.mrb[0].mxu0
        %v599 = vadd.f32 0.0, %v598
        %600 = vmatprep.mubr.f32.mxu0 0.0
        %601 = vmatmul.mubr.f32.gmra.mrb[0].mxu0 %v411
        %v602 = vpop.f32.mrb[0].mxu0
        %v603 = vadd.f32 0.0, %v602
        %v604 = vpop.f32.mrb[0].mxu0
        %v605 = vadd.f32 0.0, %v604
        %606 = vmatprep.mubr.f32.mxu0 0.0
        %607 = vmatmul.mubr.f32.gmra.mrb[0].mxu0 %v412
        %v608 = vpop.f32.mrb[0].mxu0
        %v609 = vadd.f32 0.0, %v608
        %v610 = vpop.f32.mrb[0].mxu0
        %v611 = vadd.f32 0.0, %v610
        %612 = vmatprep.mubr.f32.mxu0 0.0
        %613 = vmatmul.mubr.f32.gmra.mrb[0].mxu0 %v413
        %v614 = vpop.f32.mrb[0].mxu0
        %v615 = vadd.f32 0.0, %v614
        %v616 = vpop.f32.mrb[0].mxu0
        %v617 = vadd.f32 0.0, %v616
        %618 = vmatprep.mubr.f32.mxu0 0.0
        %619 = vmatmul.mubr.f32.gmra.mrb[0].mxu0 %v414
        %v620 = vpop.f32.mrb[0].mxu0
        %v621 = vadd.f32 0.0, %v620
        %v622 = vpop.f32.mrb[0].mxu0
        %v623 = vadd.f32 0.0, %v622
        %624 = vmatprep.mubr.f32.mxu0 0.0
        %625 = vmatmul.mubr.f32.gmra.mrb[0].mxu0 %v415
        %v626 = vpop.f32.mrb[0].mxu0
        %v627 = vadd.f32 0.0, %v626
        %v628 = vpop.f32.mrb[0].mxu0
        %v629 = vadd.f32 0.0, %v628
        %630 = vmatprep.mubr.f32.mxu0 0.0
        %631 = vmatmul.mubr.f32.gmra.mrb[0].mxu0 %v416
        %v632 = vpop.f32.mrb[0].mxu0
        %v633 = vadd.f32 0.0, %v632
        %v634 = vpop.f32.mrb[0].mxu0
        %v635 = vadd.f32 0.0, %v634
        %636 = vmatprep.mubr.f32.mxu0 0.0
        %637 = vmatmul.mubr.f32.gmra.mrb[0].mxu0 %v417
        %v638 = vpop.f32.mrb[0].mxu0
        %v639 = vadd.f32 0.0, %v638
        %v640 = vpop.f32.mrb[0].mxu0
        %v641 = vadd.f32 0.0, %v640
        %642 = vmatprep.mubr.f32.mxu0 0.0
        %643 = vmatmul.mubr.f32.gmra.mrb[0].mxu0 %v418
        %v644 = vpop.f32.mrb[0].mxu0
        %v645 = vadd.f32 0.0, %v644
        %v646 = vpop.f32.mrb[0].mxu0
        %v647 = vadd.f32 0.0, %v646
        %648 = vmatprep.mubr.f32.mxu0 0.0
        %649 = vmatmul.mubr.f32.gmra.mrb[0].mxu0 %v419
        %v650 = vpop.f32.mrb[0].mxu0
        %v651 = vadd.f32 0.0, %v650
        %v652 = vpop.f32.mrb[0].mxu0
        %v653 = vadd.f32 0.0, %v652
        %654 = vmatprep.mubr.f32.mxu0 0.0
        %655 = vmatmul.mubr.f32.gmra.mrb[0].mxu0 %v420
        %v656 = vpop.f32.mrb[0].mxu0
        %v657 = vadd.f32 0.0, %v656
        %v658 = vpop.f32.mrb[0].mxu0
        %v659 = vadd.f32 0.0, %v658
        %660 = vmatprep.mubr.f32.mxu0 0.0
        %661 = vmatmul.mubr.f32.gmra.mrb[0].mxu0 %v421
        %v662 = vpop.f32.mrb[0].mxu0
        %v663 = vadd.f32 0.0, %v662
        %v664 = vpop.f32.mrb[0].mxu0
        %v665 = vadd.f32 0.0, %v664
        %666 = vmatprep.mubr.f32.mxu0 0.0
        %667 = vmatmul.mubr.f32.gmra.mrb[0].mxu0 %v422
        %v668 = vpop.f32.mrb[0].mxu0
        %v669 = vadd.f32 0.0, %v668
        %v670 = vpop.f32.mrb[0].mxu0
        %v671 = vadd.f32 0.0, %v670
        %672 = vmatprep.mubr.f32.mxu0 0.0
        %673 = vmatmul.mubr.f32.gmra.mrb[0].mxu0 %v423
        %v674 = vpop.f32.mrb[0].mxu0
        %v675 = vadd.f32 0.0, %v674
        %v676 = vpop.f32.mrb[0].mxu0
        %v677 = vadd.f32 0.0, %v676
        %678 = vmatprep.mubr.f32.mxu0 0.0
        %679 = vmatmul.mubr.f32.gmra.mrb[0].mxu0 %v424
        %v680 = vpop.f32.mrb[0].mxu0
        %v681 = vadd.f32 0.0, %v680
        %v682 = vpop.f32.mrb[0].mxu0
        %v683 = vadd.f32 0.0, %v682
        %684 = vmatprep.mubr.f32.mxu0 0.0
        %685 = vmatmul.mubr.f32.gmra.mrb[0].mxu0 %v425
        %v686 = vpop.f32.mrb[0].mxu0
        %v687 = vadd.f32 0.0, %v686
        %v688 = vpop.f32.mrb[0].mxu0
        %v689 = vadd.f32 0.0, %v688
        %690 = vmatprep.mubr.f32.mxu0 0.0
        %691 = vmatmul.mubr.f32.gmra.mrb[0].mxu0 %v426
        %v692 = vpop.f32.mrb[0].mxu0
        %v693 = vadd.f32 0.0, %v692
        %v694 = vpop.f32.mrb[0].mxu0
        %v695 = vadd.f32 0.0, %v694
        %696 = vmatprep.mubr.f32.mxu0 0.0
        %697 = vmatmul.mubr.f32.gmra.mrb[0].mxu0 %v427
        %v698 = vpop.f32.mrb[0].mxu0
        %v699 = vadd.f32 0.0, %v698
        %v700 = vpop.f32.mrb[0].mxu0
        %v701 = vadd.f32 0.0, %v700
        %702 = vmatprep.mubr.f32.mxu0 0.0
        %703 = vmatmul.mubr.f32.gmra.mrb[0].mxu0 %v428
        %v704 = vpop.f32.mrb[0].mxu0
        %v705 = vadd.f32 0.0, %v704
        %v706 = vpop.f32.mrb[0].mxu0
        %v707 = vadd.f32 0.0, %v706
        %708 = vmatprep.mubr.f32.mxu0 0.0
        %709 = vmatmul.mubr.f32.gmra.mrb[0].mxu0 %v429
        %v710 = vpop.f32.mrb[0].mxu0
        %v711 = vadd.f32 0.0, %v710
        %v712 = vpop.f32.mrb[0].mxu0
        %v713 = vadd.f32 0.0, %v712
        %714 = vmatprep.mubr.f32.mxu0 0.0
        %715 = vmatmul.mubr.f32.gmra.mrb[0].mxu0 %v430
        %v716 = vpop.f32.mrb[0].mxu0
        %v717 = vadd.f32 0.0, %v716
        %v718 = vpop.f32.mrb[0].mxu0
        %v719 = vadd.f32 0.0, %v718
        %720 = vdwg.mxu0
        %v721 = vmax.f32 %v531, %v533
        %722 = vmax.xlane.f32.xlu0 %v721
        %v723 = vpop.xlane.xlu0 %722
        %v724 = vmax.f32 %v537, %v539
        %725 = vmax.xlane.f32.xlu0 %v724
        %v726 = vpop.xlane.xlu0 %725
        %v727 = vmax.f32 %v543, %v545
        %728 = vmax.xlane.f32.xlu0 %v727
        %v729 = vpop.xlane.xlu0 %728
        %v730 = vmax.f32 %v549, %v551
        %731 = vmax.xlane.f32.xlu0 %v730
        %v732 = vpop.xlane.xlu0 %731
        %v733 = vmax.f32 %v555, %v557
        %734 = vmax.xlane.f32.xlu0 %v733
        %v735 = vpop.xlane.xlu0 %734
        %v736 = vmax.f32 %v561, %v563
        %737 = vmax.xlane.f32.xlu0 %v736
        %v738 = vpop.xlane.xlu0 %737
        %v739 = vmax.f32 %v567, %v569
        %740 = vmax.xlane.f32.xlu0 %v739
        %v741 = vpop.xlane.xlu0 %740
        %v742 = vmax.f32 %v573, %v575
        %743 = vmax.xlane.f32.xlu0 %v742
        %v744 = vpop.xlane.xlu0 %743
        %v745 = vmax.f32 %v579, %v581
        %746 = vmax.xlane.f32.xlu0 %v745
        %v747 = vpop.xlane.xlu0 %746
        %v748 = vmax.f32 %v585, %v587
        %749 = vmax.xlane.f32.xlu0 %v748
        %v750 = vpop.xlane.xlu0 %749
        %v751 = vmax.f32 %v591, %v593
        %752 = vmax.xlane.f32.xlu0 %v751
        %v753 = vpop.xlane.xlu0 %752
        %v754 = vmax.f32 %v597, %v599
        %755 = vmax.xlane.f32.xlu0 %v754
        %v756 = vpop.xlane.xlu0 %755
        %v757 = vmax.f32 %v603, %v605
        %758 = vmax.xlane.f32.xlu0 %v757
        %v759 = vpop.xlane.xlu0 %758
        %v760 = vmax.f32 %v609, %v611
        %761 = vmax.xlane.f32.xlu0 %v760
        %v762 = vpop.xlane.xlu0 %761
        %v763 = vmax.f32 %v615, %v617
        %764 = vmax.xlane.f32.xlu0 %v763
        %v765 = vpop.xlane.xlu0 %764
        %v766 = vmax.f32 %v621, %v623
        %767 = vmax.xlane.f32.xlu0 %v766
        %v768 = vpop.xlane.xlu0 %767
        %v769 = vmax.f32 %v627, %v629
        %770 = vmax.xlane.f32.xlu0 %v769
        %v771 = vpop.xlane.xlu0 %770
        %v772 = vmax.f32 %v633, %v635
        %773 = vmax.xlane.f32.xlu0 %v772
        %v774 = vpop.xlane.xlu0 %773
        %v775 = vmax.f32 %v639, %v641
        %776 = vmax.xlane.f32.xlu0 %v775
        %v777 = vpop.xlane.xlu0 %776
        %v778 = vmax.f32 %v645, %v647
        %779 = vmax.xlane.f32.xlu0 %v778
        %v780 = vpop.xlane.xlu0 %779
        %v781 = vmax.f32 %v651, %v653
        %782 = vmax.xlane.f32.xlu0 %v781
        %v783 = vpop.xlane.xlu0 %782
        %v784 = vmax.f32 %v657, %v659
        %785 = vmax.xlane.f32.xlu0 %v784
        %v786 = vpop.xlane.xlu0 %785
        %v787 = vmax.f32 %v663, %v665
        %788 = vmax.xlane.f32.xlu0 %v787
        %v789 = vpop.xlane.xlu0 %788
        %v790 = vmax.f32 %v669, %v671
        %791 = vmax.xlane.f32.xlu0 %v790
        %v792 = vpop.xlane.xlu0 %791
        %v793 = vmax.f32 %v675, %v677
        %794 = vmax.xlane.f32.xlu0 %v793
        %v795 = vpop.xlane.xlu0 %794
        %v796 = vmax.f32 %v681, %v683
        %797 = vmax.xlane.f32.xlu0 %v796
        %v798 = vpop.xlane.xlu0 %797
        %v799 = vmax.f32 %v687, %v689
        %800 = vmax.xlane.f32.xlu0 %v799
        %v801 = vpop.xlane.xlu0 %800
        %v802 = vmax.f32 %v693, %v695
        %803 = vmax.xlane.f32.xlu0 %v802
        %v804 = vpop.xlane.xlu0 %803
        %v805 = vmax.f32 %v699, %v701
        %806 = vmax.xlane.f32.xlu0 %v805
        %v807 = vpop.xlane.xlu0 %806
        %v808 = vmax.f32 %v705, %v707
        %809 = vmax.xlane.f32.xlu0 %v808
        %v810 = vpop.xlane.xlu0 %809
        %v811 = vmax.f32 %v711, %v713
        %812 = vmax.xlane.f32.xlu0 %v811
        %v813 = vpop.xlane.xlu0 %812
        %v814 = vmax.f32 %v717, %v719
        %815 = vmax.xlane.f32.xlu0 %v814
        %v816 = vpop.xlane.xlu0 %815
        %v817 = vsub.f32 %v531, %v723
        %v818 = vsub.f32 %v533, %v723
        %v819 = vsub.f32 %v537, %v726
        %v820 = vsub.f32 %v539, %v726
        %v821 = vsub.f32 %v543, %v729
        %v822 = vsub.f32 %v545, %v729
        %v823 = vsub.f32 %v549, %v732
        %v824 = vsub.f32 %v551, %v732
        %v825 = vsub.f32 %v555, %v735
        %v826 = vsub.f32 %v557, %v735
        %v827 = vsub.f32 %v561, %v738
        %v828 = vsub.f32 %v563, %v738
        %v829 = vsub.f32 %v567, %v741
        %v830 = vsub.f32 %v569, %v741
        %v831 = vsub.f32 %v573, %v744
        %v832 = vsub.f32 %v575, %v744
        %v833 = vsub.f32 %v579, %v747
        %v834 = vsub.f32 %v581, %v747
        %v835 = vsub.f32 %v585, %v750
        %v836 = vsub.f32 %v587, %v750
        %v837 = vsub.f32 %v591, %v753
        %v838 = vsub.f32 %v593, %v753
        %v839 = vsub.f32 %v597, %v756
        %v840 = vsub.f32 %v599, %v756
        %v841 = vsub.f32 %v603, %v759
        %v842 = vsub.f32 %v605, %v759
        %v843 = vsub.f32 %v609, %v762
        %v844 = vsub.f32 %v611, %v762
        %v845 = vsub.f32 %v615, %v765
        %v846 = vsub.f32 %v617, %v765
        %v847 = vsub.f32 %v621, %v768
        %v848 = vsub.f32 %v623, %v768
        %v849 = vsub.f32 %v627, %v771
        %v850 = vsub.f32 %v629, %v771
        %v851 = vsub.f32 %v633, %v774
        %v852 = vsub.f32 %v635, %v774
        %v853 = vsub.f32 %v639, %v777
        %v854 = vsub.f32 %v641, %v777
        %v855 = vsub.f32 %v645, %v780
        %v856 = vsub.f32 %v647, %v780
        %v857 = vsub.f32 %v651, %v783
        %v858 = vsub.f32 %v653, %v783
        %v859 = vsub.f32 %v657, %v786
        %v860 = vsub.f32 %v659, %v786
        %v861 = vsub.f32 %v663, %v789
        %v862 = vsub.f32 %v665, %v789
        %v863 = vsub.f32 %v669, %v792
        %v864 = vsub.f32 %v671, %v792
        %v865 = vsub.f32 %v675, %v795
        %v866 = vsub.f32 %v677, %v795
        %v867 = vsub.f32 %v681, %v798
        %v868 = vsub.f32 %v683, %v798
        %v869 = vsub.f32 %v687, %v801
        %v870 = vsub.f32 %v689, %v801
        %v871 = vsub.f32 %v693, %v804
        %v872 = vsub.f32 %v695, %v804
        %v873 = vsub.f32 %v699, %v807
        %v874 = vsub.f32 %v701, %v807
        %v875 = vsub.f32 %v705, %v810
        %v876 = vsub.f32 %v707, %v810
        %v877 = vsub.f32 %v711, %v813
        %v878 = vsub.f32 %v713, %v813
        %v879 = vsub.f32 %v717, %v816
        %v880 = vsub.f32 %v719, %v816
        %v881 = vmul.f32 %v817, 1.442695
        %v882 = vpow.pop %v881
        %v883 = vmul.f32 %v818, 1.442695
        %v884 = vpow.pop %v883
        %v885 = vmul.f32 %v819, 1.442695
        %v886 = vpow.pop %v885
        %v887 = vmul.f32 %v820, 1.442695
        %v888 = vpow.pop %v887
        %v889 = vmul.f32 %v821, 1.442695
        %v890 = vpow.pop %v889
        %v891 = vmul.f32 %v822, 1.442695
        %v892 = vpow.pop %v891
        %v893 = vmul.f32 %v823, 1.442695
        %v894 = vpow.pop %v893
        %v895 = vmul.f32 %v824, 1.442695
        %v896 = vpow.pop %v895
        %v897 = vmul.f32 %v825, 1.442695
        %v898 = vpow.pop %v897
        %v899 = vmul.f32 %v826, 1.442695
        %v900 = vpow.pop %v899
        %v901 = vmul.f32 %v827, 1.442695
        %v902 = vpow.pop %v901
        %v903 = vmul.f32 %v828, 1.442695
        %v904 = vpow.pop %v903
        %v905 = vmul.f32 %v829, 1.442695
        %v906 = vpow.pop %v905
        %v907 = vmul.f32 %v830, 1.442695
        %v908 = vpow.pop %v907
        %v909 = vmul.f32 %v831, 1.442695
        %v910 = vpow.pop %v909
        %v911 = vmul.f32 %v832, 1.442695
        %v912 = vpow.pop %v911
        %v913 = vmul.f32 %v833, 1.442695
        %v914 = vpow.pop %v913
        %v915 = vmul.f32 %v834, 1.442695
        %v916 = vpow.pop %v915
        %v917 = vmul.f32 %v835, 1.442695
        %v918 = vpow.pop %v917
        %v919 = vmul.f32 %v836, 1.442695
        %v920 = vpow.pop %v919
        %v921 = vmul.f32 %v837, 1.442695
        %v922 = vpow.pop %v921
        %v923 = vmul.f32 %v838, 1.442695
        %v924 = vpow.pop %v923
        %v925 = vmul.f32 %v839, 1.442695
        %v926 = vpow.pop %v925
        %v927 = vmul.f32 %v840, 1.442695
        %v928 = vpow.pop %v927
        %v929 = vmul.f32 %v841, 1.442695
        %v930 = vpow.pop %v929
        %v931 = vmul.f32 %v842, 1.442695
        %v932 = vpow.pop %v931
        %v933 = vmul.f32 %v843, 1.442695
        %v934 = vpow.pop %v933
        %v935 = vmul.f32 %v844, 1.442695
        %v936 = vpow.pop %v935
        %v937 = vmul.f32 %v845, 1.442695
        %v938 = vpow.pop %v937
        %v939 = vmul.f32 %v846, 1.442695
        %v940 = vpow.pop %v939
        %v941 = vmul.f32 %v847, 1.442695
        %v942 = vpow.pop %v941
        %v943 = vmul.f32 %v848, 1.442695
        %v944 = vpow.pop %v943
        %v945 = vmul.f32 %v849, 1.442695
        %v946 = vpow.pop %v945
        %v947 = vmul.f32 %v850, 1.442695
        %v948 = vpow.pop %v947
        %v949 = vmul.f32 %v851, 1.442695
        %v950 = vpow.pop %v949
        %v951 = vmul.f32 %v852, 1.442695
        %v952 = vpow.pop %v951
        %v953 = vmul.f32 %v853, 1.442695
        %v954 = vpow.pop %v953
        %v955 = vmul.f32 %v854, 1.442695
        %v956 = vpow.pop %v955
        %v957 = vmul.f32 %v855, 1.442695
        %v958 = vpow.pop %v957
        %v959 = vmul.f32 %v856, 1.442695
        %v960 = vpow.pop %v959
        %v961 = vmul.f32 %v857, 1.442695
        %v962 = vpow.pop %v961
        %v963 = vmul.f32 %v858, 1.442695
        %v964 = vpow.pop %v963
        %v965 = vmul.f32 %v859, 1.442695
        %v966 = vpow.pop %v965
        %v967 = vmul.f32 %v860, 1.442695
        %v968 = vpow.pop %v967
        %v969 = vmul.f32 %v861, 1.442695
        %v970 = vpow.pop %v969
        %v971 = vmul.f32 %v862, 1.442695
        %v972 = vpow.pop %v971
        %v973 = vmul.f32 %v863, 1.442695
        %v974 = vpow.pop %v973
        %v975 = vmul.f32 %v864, 1.442695
        %v976 = vpow.pop %v975
        %v977 = vmul.f32 %v865, 1.442695
        %v978 = vpow.pop %v977
        %v979 = vmul.f32 %v866, 1.442695
        %v980 = vpow.pop %v979
        %v981 = vmul.f32 %v867, 1.442695
        %v982 = vpow.pop %v981
        %v983 = vmul.f32 %v868, 1.442695
        %v984 = vpow.pop %v983
        %v985 = vmul.f32 %v869, 1.442695
        %v986 = vpow.pop %v985
        %v987 = vmul.f32 %v870, 1.442695
        %v988 = vpow.pop %v987
        %v989 = vmul.f32 %v871, 1.442695
        %v990 = vpow.pop %v989
        %v991 = vmul.f32 %v872, 1.442695
        %v992 = vpow.pop %v991
        %v993 = vmul.f32 %v873, 1.442695
        %v994 = vpow.pop %v993
        %v995 = vmul.f32 %v874, 1.442695
        %v996 = vpow.pop %v995
        %v997 = vmul.f32 %v875, 1.442695
        %v998 = vpow.pop %v997
        %v999 = vmul.f32 %v876, 1.442695
        %v1000 = vpow.pop %v999
        %v1001 = vmul.f32 %v877, 1.442695
        %v1002 = vpow.pop %v1001
        %v1003 = vmul.f32 %v878, 1.442695
        %v1004 = vpow.pop %v1003
        %v1005 = vmul.f32 %v879, 1.442695
        %v1006 = vpow.pop %v1005
        %v1007 = vmul.f32 %v880, 1.442695
        %v1008 = vpow.pop %v1007
        %v1009 = vadd.f32 %v882, %v884
        %1010 = vadd.xlane.f32.xlu0 %v1009
        %v1011 = vpop.xlane.xlu0 %1010
        %v1012 = vadd.f32 %v886, %v888
        %1013 = vadd.xlane.f32.xlu0 %v1012
        %v1014 = vpop.xlane.xlu0 %1013
        %v1015 = vadd.f32 %v890, %v892
        %1016 = vadd.xlane.f32.xlu0 %v1015
        %v1017 = vpop.xlane.xlu0 %1016
        %v1018 = vadd.f32 %v894, %v896
        %1019 = vadd.xlane.f32.xlu0 %v1018
        %v1020 = vpop.xlane.xlu0 %1019
        %v1021 = vadd.f32 %v898, %v900
        %1022 = vadd.xlane.f32.xlu0 %v1021
        %v1023 = vpop.xlane.xlu0 %1022
        %v1024 = vadd.f32 %v902, %v904
        %1025 = vadd.xlane.f32.xlu0 %v1024
        %v1026 = vpop.xlane.xlu0 %1025
        %v1027 = vadd.f32 %v906, %v908
        %1028 = vadd.xlane.f32.xlu0 %v1027
        %v1029 = vpop.xlane.xlu0 %1028
        %v1030 = vadd.f32 %v910, %v912
        %1031 = vadd.xlane.f32.xlu0 %v1030
        %v1032 = vpop.xlane.xlu0 %1031
        %v1033 = vadd.f32 %v914, %v916
        %1034 = vadd.xlane.f32.xlu0 %v1033
        %v1035 = vpop.xlane.xlu0 %1034
        %v1036 = vadd.f32 %v918, %v920
        %1037 = vadd.xlane.f32.xlu0 %v1036
        %v1038 = vpop.xlane.xlu0 %1037
        %v1039 = vadd.f32 %v922, %v924
        %1040 = vadd.xlane.f32.xlu0 %v1039
        %v1041 = vpop.xlane.xlu0 %1040
        %v1042 = vadd.f32 %v926, %v928
        %1043 = vadd.xlane.f32.xlu0 %v1042
        %v1044 = vpop.xlane.xlu0 %1043
        %v1045 = vadd.f32 %v930, %v932
        %1046 = vadd.xlane.f32.xlu0 %v1045
        %v1047 = vpop.xlane.xlu0 %1046
        %v1048 = vadd.f32 %v934, %v936
        %1049 = vadd.xlane.f32.xlu0 %v1048
        %v1050 = vpop.xlane.xlu0 %1049
        %v1051 = vadd.f32 %v938, %v940
        %1052 = vadd.xlane.f32.xlu0 %v1051
        %v1053 = vpop.xlane.xlu0 %1052
        %v1054 = vadd.f32 %v942, %v944
        %1055 = vadd.xlane.f32.xlu0 %v1054
        %v1056 = vpop.xlane.xlu0 %1055
        %v1057 = vadd.f32 %v946, %v948
        %1058 = vadd.xlane.f32.xlu0 %v1057
        %v1059 = vpop.xlane.xlu0 %1058
        %v1060 = vadd.f32 %v950, %v952
        %1061 = vadd.xlane.f32.xlu0 %v1060
        %v1062 = vpop.xlane.xlu0 %1061
        %v1063 = vadd.f32 %v954, %v956
        %1064 = vadd.xlane.f32.xlu0 %v1063
        %v1065 = vpop.xlane.xlu0 %1064
        %v1066 = vadd.f32 %v958, %v960
        %1067 = vadd.xlane.f32.xlu0 %v1066
        %v1068 = vpop.xlane.xlu0 %1067
        %v1069 = vadd.f32 %v962, %v964
        %1070 = vadd.xlane.f32.xlu0 %v1069
        %v1071 = vpop.xlane.xlu0 %1070
        %v1072 = vadd.f32 %v966, %v968
        %1073 = vadd.xlane.f32.xlu0 %v1072
        %v1074 = vpop.xlane.xlu0 %1073
        %v1075 = vadd.f32 %v970, %v972
        %1076 = vadd.xlane.f32.xlu0 %v1075
        %v1077 = vpop.xlane.xlu0 %1076
        %v1078 = vadd.f32 %v974, %v976
        %1079 = vadd.xlane.f32.xlu0 %v1078
        %v1080 = vpop.xlane.xlu0 %1079
        %v1081 = vadd.f32 %v978, %v980
        %1082 = vadd.xlane.f32.xlu0 %v1081
        %v1083 = vpop.xlane.xlu0 %1082
        %v1084 = vadd.f32 %v982, %v984
        %1085 = vadd.xlane.f32.xlu0 %v1084
        %v1086 = vpop.xlane.xlu0 %1085
        %v1087 = vadd.f32 %v986, %v988
        %1088 = vadd.xlane.f32.xlu0 %v1087
        %v1089 = vpop.xlane.xlu0 %1088
        %v1090 = vadd.f32 %v990, %v992
        %1091 = vadd.xlane.f32.xlu0 %v1090
        %v1092 = vpop.xlane.xlu0 %1091
        %v1093 = vadd.f32 %v994, %v996
        %1094 = vadd.xlane.f32.xlu0 %v1093
        %v1095 = vpop.xlane.xlu0 %1094
        %v1096 = vadd.f32 %v998, %v1000
        %1097 = vadd.xlane.f32.xlu0 %v1096
        %v1098 = vpop.xlane.xlu0 %1097
        %v1099 = vadd.f32 %v1002, %v1004
        %1100 = vadd.xlane.f32.xlu0 %v1099
        %v1101 = vpop.xlane.xlu0 %1100
        %v1102 = vadd.f32 %v1006, %v1008
        %1103 = vadd.xlane.f32.xlu0 %v1102
        %v1104 = vpop.xlane.xlu0 %1103
        %v1105 = vrcp.pop %v1011
        %v1106 = vrcp.pop %v1014
        %v1107 = vrcp.pop %v1017
        %v1108 = vrcp.pop %v1020
        %v1109 = vrcp.pop %v1023
        %v1110 = vrcp.pop %v1026
        %v1111 = vrcp.pop %v1029
        %v1112 = vrcp.pop %v1032
        %v1113 = vrcp.pop %v1035
        %v1114 = vrcp.pop %v1038
        %v1115 = vrcp.pop %v1041
        %v1116 = vrcp.pop %v1044
        %v1117 = vrcp.pop %v1047
        %v1118 = vrcp.pop %v1050
        %v1119 = vrcp.pop %v1053
        %v1120 = vrcp.pop %v1056
        %v1121 = vrcp.pop %v1059
        %v1122 = vrcp.pop %v1062
        %v1123 = vrcp.pop %v1065
        %v1124 = vrcp.pop %v1068
        %v1125 = vrcp.pop %v1071
        %v1126 = vrcp.pop %v1074
        %v1127 = vrcp.pop %v1077
        %v1128 = vrcp.pop %v1080
        %v1129 = vrcp.pop %v1083
        %v1130 = vrcp.pop %v1086
        %v1131 = vrcp.pop %v1089
        %v1132 = vrcp.pop %v1092
        %v1133 = vrcp.pop %v1095
        %v1134 = vrcp.pop %v1098
        %v1135 = vrcp.pop %v1101
        %v1136 = vrcp.pop %v1104
        %v1137 = vmul.f32 %v882, %v1105
        %v1138 = vmul.f32 %v884, %v1105
        %v1139 = vmul.f32 %v886, %v1106
        %v1140 = vmul.f32 %v888, %v1106
        %v1141 = vmul.f32 %v890, %v1107
        %v1142 = vmul.f32 %v892, %v1107
        %v1143 = vmul.f32 %v894, %v1108
        %v1144 = vmul.f32 %v896, %v1108
        %v1145 = vmul.f32 %v898, %v1109
        %v1146 = vmul.f32 %v900, %v1109
        %v1147 = vmul.f32 %v902, %v1110
        %v1148 = vmul.f32 %v904, %v1110
        %v1149 = vmul.f32 %v906, %v1111
        %v1150 = vmul.f32 %v908, %v1111
        %v1151 = vmul.f32 %v910, %v1112
        %v1152 = vmul.f32 %v912, %v1112
        %v1153 = vmul.f32 %v914, %v1113
        %v1154 = vmul.f32 %v916, %v1113
        %v1155 = vmul.f32 %v918, %v1114
        %v1156 = vmul.f32 %v920, %v1114
        %v1157 = vmul.f32 %v922, %v1115
        %v1158 = vmul.f32 %v924, %v1115
        %v1159 = vmul.f32 %v926, %v1116
        %v1160 = vmul.f32 %v928, %v1116
        %v1161 = vmul.f32 %v930, %v1117
        %v1162 = vmul.f32 %v932, %v1117
        %v1163 = vmul.f32 %v934, %v1118
        %v1164 = vmul.f32 %v936, %v1118
        %v1165 = vmul.f32 %v938, %v1119
        %v1166 = vmul.f32 %v940, %v1119
        %v1167 = vmul.f32 %v942, %v1120
        %v1168 = vmul.f32 %v944, %v1120
        %v1169 = vmul.f32 %v946, %v1121
        %v1170 = vmul.f32 %v948, %v1121
        %v1171 = vmul.f32 %v950, %v1122
        %v1172 = vmul.f32 %v952, %v1122
        %v1173 = vmul.f32 %v954, %v1123
        %v1174 = vmul.f32 %v956, %v1123
        %v1175 = vmul.f32 %v958, %v1124
        %v1176 = vmul.f32 %v960, %v1124
        %v1177 = vmul.f32 %v962, %v1125
        %v1178 = vmul.f32 %v964, %v1125
        %v1179 = vmul.f32 %v966, %v1126
        %v1180 = vmul.f32 %v968, %v1126
        %v1181 = vmul.f32 %v970, %v1127
        %v1182 = vmul.f32 %v972, %v1127
        %v1183 = vmul.f32 %v974, %v1128
        %v1184 = vmul.f32 %v976, %v1128
        %v1185 = vmul.f32 %v978, %v1129
        %v1186 = vmul.f32 %v980, %v1129
        %v1187 = vmul.f32 %v982, %v1130
        %v1188 = vmul.f32 %v984, %v1130
        %v1189 = vmul.f32 %v986, %v1131
        %v1190 = vmul.f32 %v988, %v1131
        %v1191 = vmul.f32 %v990, %v1132
        %v1192 = vmul.f32 %v992, %v1132
        %v1193 = vmul.f32 %v994, %v1133
        %v1194 = vmul.f32 %v996, %v1133
        %v1195 = vmul.f32 %v998, %v1134
        %v1196 = vmul.f32 %v1000, %v1134
        %v1197 = vmul.f32 %v1002, %v1135
        %v1198 = vmul.f32 %v1004, %v1135
        %v1199 = vmul.f32 %v1006, %v1136
        %v1200 = vmul.f32 %v1008, %v1136
        %v1203 = vunpack.c.l.s4 1983009808
        %v1204 = vunpack.c.0.s8 %v1203
        %v1205 = vlaneseq
        %v1206 = vshrl.u32 %v1205, 7
        %v1207 = vsub.s32 %v1204, %v1206
        %v1208 = vrot.slane %v463, %v1207
        %v1209 = vcombine.high %v1208, %v1208
        %1212 = vmatprep.subr.mxu0 %v1138
        %1213 = vmatpush1.xpose.msra.mxu0 %v1137
        %1214 = vmatprep.subr.mxu0 %v1140
        %1215 = vmatpush1.xpose.msra.mxu0 %v1139
        %1216 = vmatprep.subr.mxu0 %v1142
        %1217 = vmatpush1.xpose.msra.mxu0 %v1141
        %1218 = vmatprep.subr.mxu0 %v1144
        %1219 = vmatpush1.xpose.msra.mxu0 %v1143
        %1220 = vmatprep.subr.mxu0 %v1146
        %1221 = vmatpush1.xpose.msra.mxu0 %v1145
        %1222 = vmatprep.subr.mxu0 %v1148
        %1223 = vmatpush1.xpose.msra.mxu0 %v1147
        %1224 = vmatprep.subr.mxu0 %v1150
        %1225 = vmatpush1.xpose.msra.mxu0 %v1149
        %1226 = vmatprep.subr.mxu0 %v1152
        %1227 = vmatpush1.xpose.msra.mxu0 %v1151
        %1228 = vmatprep.subr.mxu0 %v1154
        %1229 = vmatpush1.xpose.msra.mxu0 %v1153
        %1230 = vmatprep.subr.mxu0 %v1156
        %1231 = vmatpush1.xpose.msra.mxu0 %v1155
        %1232 = vmatprep.subr.mxu0 %v1158
        %1233 = vmatpush1.xpose.msra.mxu0 %v1157
        %1234 = vmatprep.subr.mxu0 %v1160
        %1235 = vmatpush1.xpose.msra.mxu0 %v1159
        %1236 = vmatprep.subr.mxu0 %v1162
        %1237 = vmatpush1.xpose.msra.mxu0 %v1161
        %1238 = vmatprep.subr.mxu0 %v1164
        %1239 = vmatpush1.xpose.msra.mxu0 %v1163
        %1240 = vmatprep.subr.mxu0 %v1166
        %1241 = vmatpush1.xpose.msra.mxu0 %v1165
        %1242 = vmatprep.subr.mxu0 %v1168
        %1243 = vmatpush1.xpose.msra.mxu0 %v1167
        %1244 = vmatprep.subr.mxu0 %v1170
        %1245 = vmatpush1.xpose.msra.mxu0 %v1169
        %1246 = vmatprep.subr.mxu0 %v1172
        %1247 = vmatpush1.xpose.msra.mxu0 %v1171
        %1248 = vmatprep.subr.mxu0 %v1174
        %1249 = vmatpush1.xpose.msra.mxu0 %v1173
        %1250 = vmatprep.subr.mxu0 %v1176
        %1251 = vmatpush1.xpose.msra.mxu0 %v1175
        %1252 = vmatprep.subr.mxu0 %v1178
        %1253 = vmatpush1.xpose.msra.mxu0 %v1177
        %1254 = vmatprep.subr.mxu0 %v1180
        %1255 = vmatpush1.xpose.msra.mxu0 %v1179
        %1256 = vmatprep.subr.mxu0 %v1182
        %1257 = vmatpush1.xpose.msra.mxu0 %v1181
        %1258 = vmatprep.subr.mxu0 %v1184
        %1259 = vmatpush1.xpose.msra.mxu0 %v1183
        %1260 = vmatprep.subr.mxu0 %v1186
        %1261 = vmatpush1.xpose.msra.mxu0 %v1185
        %1262 = vmatprep.subr.mxu0 %v1188
        %1263 = vmatpush1.xpose.msra.mxu0 %v1187
        %1264 = vmatprep.subr.mxu0 %v1190
        %1265 = vmatpush1.xpose.msra.mxu0 %v1189
        %1266 = vmatprep.subr.mxu0 %v1192
        %1267 = vmatpush1.xpose.msra.mxu0 %v1191
        %1268 = vmatprep.subr.mxu0 %v1194
        %1269 = vmatpush1.xpose.msra.mxu0 %v1193
        %1270 = vmatprep.subr.mxu0 %v1196
        %1271 = vmatpush1.xpose.msra.mxu0 %v1195
        %1272 = vmatprep.subr.mxu0 %v1198
        %1273 = vmatpush1.xpose.msra.mxu0 %v1197
        %1274 = vmatprep.subr.mxu0 %v1200
        %1275 = vmatpush1.xpose.msra.mxu0 %v1199
        %1276 = vmatprep.mubr.f32.mxu0 %v1209
        %1277 = vmatmul.mubr.f32.gmra.mrb[0].mxu0 %v1208
        %v1278 = vpop.f32.mrb[0].mxu0
        %v1279 = vadd.f32 0.0, %v1278
        %v1280 = vpop.f32.mrb[0].mxu0
        %v1281 = vadd.f32 0.0, %v1280
        %1282 = vdwg.mxu0
        %1283 = vmatprep.subr.mxu0 0.0
        %1284 = vmatpush1.xpose.msra.mxu0 %v399
        %1285 = vmatprep.subr.mxu0 0.0
        %1286 = vmatpush1.xpose.msra.mxu0 %v400
        %1287 = vmatprep.subr.mxu0 0.0
        %1288 = vmatpush1.xpose.msra.mxu0 %v401
        %1289 = vmatprep.subr.mxu0 0.0
        %1290 = vmatpush1.xpose.msra.mxu0 %v402
        %1291 = vmatprep.subr.mxu0 0.0
        %1292 = vmatpush1.xpose.msra.mxu0 %v403
        %1293 = vmatprep.subr.mxu0 0.0
        %1294 = vmatpush1.xpose.msra.mxu0 %v404
        %1295 = vmatprep.subr.mxu0 0.0
        %1296 = vmatpush1.xpose.msra.mxu0 %v405
        %1297 = vmatprep.subr.mxu0 0.0
        %1298 = vmatpush1.xpose.msra.mxu0 %v406
        %1299 = vmatprep.subr.mxu0 0.0
        %1300 = vmatpush1.xpose.msra.mxu0 %v407
        %1301 = vmatprep.subr.mxu0 0.0
        %1302 = vmatpush1.xpose.msra.mxu0 %v408
        %1303 = vmatprep.subr.mxu0 0.0
        %1304 = vmatpush1.xpose.msra.mxu0 %v409
        %1305 = vmatprep.subr.mxu0 0.0
        %1306 = vmatpush1.xpose.msra.mxu0 %v410
        %1307 = vmatprep.subr.mxu0 0.0
        %1308 = vmatpush1.xpose.msra.mxu0 %v411
        %1309 = vmatprep.subr.mxu0 0.0
        %1310 = vmatpush1.xpose.msra.mxu0 %v412
        %1311 = vmatprep.subr.mxu0 0.0
        %1312 = vmatpush1.xpose.msra.mxu0 %v413
        %1313 = vmatprep.subr.mxu0 0.0
        %1314 = vmatpush1.xpose.msra.mxu0 %v414
        %1315 = vmatprep.subr.mxu0 0.0
        %1316 = vmatpush1.xpose.msra.mxu0 %v415
        %1317 = vmatprep.subr.mxu0 0.0
        %1318 = vmatpush1.xpose.msra.mxu0 %v416
        %1319 = vmatprep.subr.mxu0 0.0
        %1320 = vmatpush1.xpose.msra.mxu0 %v417
        %1321 = vmatprep.subr.mxu0 0.0
        %1322 = vmatpush1.xpose.msra.mxu0 %v418
        %1323 = vmatprep.subr.mxu0 0.0
        %1324 = vmatpush1.xpose.msra.mxu0 %v419
        %1325 = vmatprep.subr.mxu0 0.0
        %1326 = vmatpush1.xpose.msra.mxu0 %v420
        %1327 = vmatprep.subr.mxu0 0.0
        %1328 = vmatpush1.xpose.msra.mxu0 %v421
        %1329 = vmatprep.subr.mxu0 0.0
        %1330 = vmatpush1.xpose.msra.mxu0 %v422
        %1331 = vmatprep.subr.mxu0 0.0
        %1332 = vmatpush1.xpose.msra.mxu0 %v423
        %1333 = vmatprep.subr.mxu0 0.0
        %1334 = vmatpush1.xpose.msra.mxu0 %v424
        %1335 = vmatprep.subr.mxu0 0.0
        %1336 = vmatpush1.xpose.msra.mxu0 %v425
        %1337 = vmatprep.subr.mxu0 0.0
        %1338 = vmatpush1.xpose.msra.mxu0 %v426
        %1339 = vmatprep.subr.mxu0 0.0
        %1340 = vmatpush1.xpose.msra.mxu0 %v427
        %1341 = vmatprep.subr.mxu0 0.0
        %1342 = vmatpush1.xpose.msra.mxu0 %v428
        %1343 = vmatprep.subr.mxu0 0.0
        %1344 = vmatpush1.xpose.msra.mxu0 %v429
        %1345 = vmatprep.subr.mxu0 0.0
        %1346 = vmatpush1.xpose.msra.mxu0 %v430
        %1347 = vmatprep.mubr.f32.mxu0 0.0
        %1348 = vmatmul.mubr.f32.gmra.mrb[0].mxu0 %v431
        %v1349 = vpop.f32.mrb[0].mxu0
        %v1350 = vadd.f32 0.0, %v1349
        %v1351 = vpop.f32.mrb[0].mxu0
        %v1352 = vadd.f32 0.0, %v1351
        %1353 = vmatprep.mubr.f32.mxu0 0.0
        %1354 = vmatmul.mubr.f32.gmra.mrb[0].mxu0 %v432
        %v1355 = vpop.f32.mrb[0].mxu0
        %v1356 = vadd.f32 0.0, %v1355
        %v1357 = vpop.f32.mrb[0].mxu0
        %v1358 = vadd.f32 0.0, %v1357
        %1359 = vmatprep.mubr.f32.mxu0 0.0
        %1360 = vmatmul.mubr.f32.gmra.mrb[0].mxu0 %v433
        %v1361 = vpop.f32.mrb[0].mxu0
        %v1362 = vadd.f32 0.0, %v1361
        %v1363 = vpop.f32.mrb[0].mxu0
        %v1364 = vadd.f32 0.0, %v1363
        %1365 = vmatprep.mubr.f32.mxu0 0.0
        %1366 = vmatmul.mubr.f32.gmra.mrb[0].mxu0 %v434
        %v1367 = vpop.f32.mrb[0].mxu0
        %v1368 = vadd.f32 0.0, %v1367
        %v1369 = vpop.f32.mrb[0].mxu0
        %v1370 = vadd.f32 0.0, %v1369
        %1371 = vmatprep.mubr.f32.mxu0 0.0
        %1372 = vmatmul.mubr.f32.gmra.mrb[0].mxu0 %v435
        %v1373 = vpop.f32.mrb[0].mxu0
        %v1374 = vadd.f32 0.0, %v1373
        %v1375 = vpop.f32.mrb[0].mxu0
        %v1376 = vadd.f32 0.0, %v1375
        %1377 = vmatprep.mubr.f32.mxu0 0.0
        %1378 = vmatmul.mubr.f32.gmra.mrb[0].mxu0 %v436
        %v1379 = vpop.f32.mrb[0].mxu0
        %v1380 = vadd.f32 0.0, %v1379
        %v1381 = vpop.f32.mrb[0].mxu0
        %v1382 = vadd.f32 0.0, %v1381
        %1383 = vmatprep.mubr.f32.mxu0 0.0
        %1384 = vmatmul.mubr.f32.gmra.mrb[0].mxu0 %v437
        %v1385 = vpop.f32.mrb[0].mxu0
        %v1386 = vadd.f32 0.0, %v1385
        %v1387 = vpop.f32.mrb[0].mxu0
        %v1388 = vadd.f32 0.0, %v1387
        %1389 = vmatprep.mubr.f32.mxu0 0.0
        %1390 = vmatmul.mubr.f32.gmra.mrb[0].mxu0 %v438
        %v1391 = vpop.f32.mrb[0].mxu0
        %v1392 = vadd.f32 0.0, %v1391
        %v1393 = vpop.f32.mrb[0].mxu0
        %v1394 = vadd.f32 0.0, %v1393
        %1395 = vmatprep.mubr.f32.mxu0 0.0
        %1396 = vmatmul.mubr.f32.gmra.mrb[0].mxu0 %v439
        %v1397 = vpop.f32.mrb[0].mxu0
        %v1398 = vadd.f32 0.0, %v1397
        %v1399 = vpop.f32.mrb[0].mxu0
        %v1400 = vadd.f32 0.0, %v1399
        %1401 = vmatprep.mubr.f32.mxu0 0.0
        %1402 = vmatmul.mubr.f32.gmra.mrb[0].mxu0 %v440
        %v1403 = vpop.f32.mrb[0].mxu0
        %v1404 = vadd.f32 0.0, %v1403
        %v1405 = vpop.f32.mrb[0].mxu0
        %v1406 = vadd.f32 0.0, %v1405
        %1407 = vmatprep.mubr.f32.mxu0 0.0
        %1408 = vmatmul.mubr.f32.gmra.mrb[0].mxu0 %v441
        %v1409 = vpop.f32.mrb[0].mxu0
        %v1410 = vadd.f32 0.0, %v1409
        %v1411 = vpop.f32.mrb[0].mxu0
        %v1412 = vadd.f32 0.0, %v1411
        %1413 = vmatprep.mubr.f32.mxu0 0.0
        %1414 = vmatmul.mubr.f32.gmra.mrb[0].mxu0 %v442
        %v1415 = vpop.f32.mrb[0].mxu0
        %v1416 = vadd.f32 0.0, %v1415
        %v1417 = vpop.f32.mrb[0].mxu0
        %v1418 = vadd.f32 0.0, %v1417
        %1419 = vmatprep.mubr.f32.mxu0 0.0
        %1420 = vmatmul.mubr.f32.gmra.mrb[0].mxu0 %v443
        %v1421 = vpop.f32.mrb[0].mxu0
        %v1422 = vadd.f32 0.0, %v1421
        %v1423 = vpop.f32.mrb[0].mxu0
        %v1424 = vadd.f32 0.0, %v1423
        %1425 = vmatprep.mubr.f32.mxu0 0.0
        %1426 = vmatmul.mubr.f32.gmra.mrb[0].mxu0 %v444
        %v1427 = vpop.f32.mrb[0].mxu0
        %v1428 = vadd.f32 0.0, %v1427
        %v1429 = vpop.f32.mrb[0].mxu0
        %v1430 = vadd.f32 0.0, %v1429
        %1431 = vmatprep.mubr.f32.mxu0 0.0
        %1432 = vmatmul.mubr.f32.gmra.mrb[0].mxu0 %v445
        %v1433 = vpop.f32.mrb[0].mxu0
        %v1434 = vadd.f32 0.0, %v1433
        %v1435 = vpop.f32.mrb[0].mxu0
        %v1436 = vadd.f32 0.0, %v1435
        %1437 = vmatprep.mubr.f32.mxu0 0.0
        %1438 = vmatmul.mubr.f32.gmra.mrb[0].mxu0 %v446
        %v1439 = vpop.f32.mrb[0].mxu0
        %v1440 = vadd.f32 0.0, %v1439
        %v1441 = vpop.f32.mrb[0].mxu0
        %v1442 = vadd.f32 0.0, %v1441
        %1443 = vmatprep.mubr.f32.mxu0 0.0
        %1444 = vmatmul.mubr.f32.gmra.mrb[0].mxu0 %v447
        %v1445 = vpop.f32.mrb[0].mxu0
        %v1446 = vadd.f32 0.0, %v1445
        %v1447 = vpop.f32.mrb[0].mxu0
        %v1448 = vadd.f32 0.0, %v1447
        %1449 = vmatprep.mubr.f32.mxu0 0.0
        %1450 = vmatmul.mubr.f32.gmra.mrb[0].mxu0 %v448
        %v1451 = vpop.f32.mrb[0].mxu0
        %v1452 = vadd.f32 0.0, %v1451
        %v1453 = vpop.f32.mrb[0].mxu0
        %v1454 = vadd.f32 0.0, %v1453
        %1455 = vmatprep.mubr.f32.mxu0 0.0
        %1456 = vmatmul.mubr.f32.gmra.mrb[0].mxu0 %v449
        %v1457 = vpop.f32.mrb[0].mxu0
        %v1458 = vadd.f32 0.0, %v1457
        %v1459 = vpop.f32.mrb[0].mxu0
        %v1460 = vadd.f32 0.0, %v1459
        %1461 = vmatprep.mubr.f32.mxu0 0.0
        %1462 = vmatmul.mubr.f32.gmra.mrb[0].mxu0 %v450
        %v1463 = vpop.f32.mrb[0].mxu0
        %v1464 = vadd.f32 0.0, %v1463
        %v1465 = vpop.f32.mrb[0].mxu0
        %v1466 = vadd.f32 0.0, %v1465
        %1467 = vmatprep.mubr.f32.mxu0 0.0
        %1468 = vmatmul.mubr.f32.gmra.mrb[0].mxu0 %v451
        %v1469 = vpop.f32.mrb[0].mxu0
        %v1470 = vadd.f32 0.0, %v1469
        %v1471 = vpop.f32.mrb[0].mxu0
        %v1472 = vadd.f32 0.0, %v1471
        %1473 = vmatprep.mubr.f32.mxu0 0.0
        %1474 = vmatmul.mubr.f32.gmra.mrb[0].mxu0 %v452
        %v1475 = vpop.f32.mrb[0].mxu0
        %v1476 = vadd.f32 0.0, %v1475
        %v1477 = vpop.f32.mrb[0].mxu0
        %v1478 = vadd.f32 0.0, %v1477
        %1479 = vmatprep.mubr.f32.mxu0 0.0
        %1480 = vmatmul.mubr.f32.gmra.mrb[0].mxu0 %v453
        %v1481 = vpop.f32.mrb[0].mxu0
        %v1482 = vadd.f32 0.0, %v1481
        %v1483 = vpop.f32.mrb[0].mxu0
        %v1484 = vadd.f32 0.0, %v1483
        %1485 = vmatprep.mubr.f32.mxu0 0.0
        %1486 = vmatmul.mubr.f32.gmra.mrb[0].mxu0 %v454
        %v1487 = vpop.f32.mrb[0].mxu0
        %v1488 = vadd.f32 0.0, %v1487
        %v1489 = vpop.f32.mrb[0].mxu0
        %v1490 = vadd.f32 0.0, %v1489
        %1491 = vmatprep.mubr.f32.mxu0 0.0
        %1492 = vmatmul.mubr.f32.gmra.mrb[0].mxu0 %v455
        %v1493 = vpop.f32.mrb[0].mxu0
        %v1494 = vadd.f32 0.0, %v1493
        %v1495 = vpop.f32.mrb[0].mxu0
        %v1496 = vadd.f32 0.0, %v1495
        %1497 = vmatprep.mubr.f32.mxu0 0.0
        %1498 = vmatmul.mubr.f32.gmra.mrb[0].mxu0 %v456
        %v1499 = vpop.f32.mrb[0].mxu0
        %v1500 = vadd.f32 0.0, %v1499
        %v1501 = vpop.f32.mrb[0].mxu0
        %v1502 = vadd.f32 0.0, %v1501
        %1503 = vmatprep.mubr.f32.mxu0 0.0
        %1504 = vmatmul.mubr.f32.gmra.mrb[0].mxu0 %v457
        %v1505 = vpop.f32.mrb[0].mxu0
        %v1506 = vadd.f32 0.0, %v1505
        %v1507 = vpop.f32.mrb[0].mxu0
        %v1508 = vadd.f32 0.0, %v1507
        %1509 = vmatprep.mubr.f32.mxu0 0.0
        %1510 = vmatmul.mubr.f32.gmra.mrb[0].mxu0 %v458
        %v1511 = vpop.f32.mrb[0].mxu0
        %v1512 = vadd.f32 0.0, %v1511
        %v1513 = vpop.f32.mrb[0].mxu0
        %v1514 = vadd.f32 0.0, %v1513
        %1515 = vmatprep.mubr.f32.mxu0 0.0
        %1516 = vmatmul.mubr.f32.gmra.mrb[0].mxu0 %v459
        %v1517 = vpop.f32.mrb[0].mxu0
        %v1518 = vadd.f32 0.0, %v1517
        %v1519 = vpop.f32.mrb[0].mxu0
        %v1520 = vadd.f32 0.0, %v1519
        %1521 = vmatprep.mubr.f32.mxu0 0.0
        %1522 = vmatmul.mubr.f32.gmra.mrb[0].mxu0 %v460
        %v1523 = vpop.f32.mrb[0].mxu0
        %v1524 = vadd.f32 0.0, %v1523
        %v1525 = vpop.f32.mrb[0].mxu0
        %v1526 = vadd.f32 0.0, %v1525
        %1527 = vmatprep.mubr.f32.mxu0 0.0
        %1528 = vmatmul.mubr.f32.gmra.mrb[0].mxu0 %v461
        %v1529 = vpop.f32.mrb[0].mxu0
        %v1530 = vadd.f32 0.0, %v1529
        %v1531 = vpop.f32.mrb[0].mxu0
        %v1532 = vadd.f32 0.0, %v1531
        %1533 = vmatprep.mubr.f32.mxu0 0.0
        %1534 = vmatmul.mubr.f32.gmra.mrb[0].mxu0 %v462
        %v1535 = vpop.f32.mrb[0].mxu0
        %v1536 = vadd.f32 0.0, %v1535
        %v1537 = vpop.f32.mrb[0].mxu0
        %v1538 = vadd.f32 0.0, %v1537
        %1539 = vdwg.mxu0
        %v1540 = vlaneseq
        %v1541 = vand.u32 %v1540, 127
        %v1542 = vadd.s32 %v1541, 128
        %vm1543 = vcmp.eq.f32.partialorder %v531, %v723
        %vm1544 = vcmp.eq.f32.partialorder %v533, %v723
        %vm1545 = vcmp.eq.f32.partialorder %v537, %v726
        %vm1546 = vcmp.eq.f32.partialorder %v539, %v726
        %vm1547 = vcmp.eq.f32.partialorder %v543, %v729
        %vm1548 = vcmp.eq.f32.partialorder %v545, %v729
        %vm1549 = vcmp.eq.f32.partialorder %v549, %v732
        %vm1550 = vcmp.eq.f32.partialorder %v551, %v732
        %vm1551 = vcmp.eq.f32.partialorder %v555, %v735
        %vm1552 = vcmp.eq.f32.partialorder %v557, %v735
        %vm1553 = vcmp.eq.f32.partialorder %v561, %v738
        %vm1554 = vcmp.eq.f32.partialorder %v563, %v738
        %vm1555 = vcmp.eq.f32.partialorder %v567, %v741
        %vm1556 = vcmp.eq.f32.partialorder %v569, %v741
        %vm1557 = vcmp.eq.f32.partialorder %v573, %v744
        %vm1558 = vcmp.eq.f32.partialorder %v575, %v744
        %vm1559 = vcmp.eq.f32.partialorder %v579, %v747
        %vm1560 = vcmp.eq.f32.partialorder %v581, %v747
        %vm1561 = vcmp.eq.f32.partialorder %v585, %v750
        %vm1562 = vcmp.eq.f32.partialorder %v587, %v750
        %vm1563 = vcmp.eq.f32.partialorder %v591, %v753
        %vm1564 = vcmp.eq.f32.partialorder %v593, %v753
        %vm1565 = vcmp.eq.f32.partialorder %v597, %v756
        %vm1566 = vcmp.eq.f32.partialorder %v599, %v756
        %vm1567 = vcmp.eq.f32.partialorder %v603, %v759
        %vm1568 = vcmp.eq.f32.partialorder %v605, %v759
        %vm1569 = vcmp.eq.f32.partialorder %v609, %v762
        %vm1570 = vcmp.eq.f32.partialorder %v611, %v762
        %vm1571 = vcmp.eq.f32.partialorder %v615, %v765
        %vm1572 = vcmp.eq.f32.partialorder %v617, %v765
        %vm1573 = vcmp.eq.f32.partialorder %v621, %v768
        %vm1574 = vcmp.eq.f32.partialorder %v623, %v768
        %vm1575 = vcmp.eq.f32.partialorder %v627, %v771
        %vm1576 = vcmp.eq.f32.partialorder %v629, %v771
        %vm1577 = vcmp.eq.f32.partialorder %v633, %v774
        %vm1578 = vcmp.eq.f32.partialorder %v635, %v774
        %vm1579 = vcmp.eq.f32.partialorder %v639, %v777
        %vm1580 = vcmp.eq.f32.partialorder %v641, %v777
        %vm1581 = vcmp.eq.f32.partialorder %v645, %v780
        %vm1582 = vcmp.eq.f32.partialorder %v647, %v780
        %vm1583 = vcmp.eq.f32.partialorder %v651, %v783
        %vm1584 = vcmp.eq.f32.partialorder %v653, %v783
        %vm1585 = vcmp.eq.f32.partialorder %v657, %v786
        %vm1586 = vcmp.eq.f32.partialorder %v659, %v786
        %vm1587 = vcmp.eq.f32.partialorder %v663, %v789
        %vm1588 = vcmp.eq.f32.partialorder %v665, %v789
        %vm1589 = vcmp.eq.f32.partialorder %v669, %v792
        %vm1590 = vcmp.eq.f32.partialorder %v671, %v792
        %vm1591 = vcmp.eq.f32.partialorder %v675, %v795
        %vm1592 = vcmp.eq.f32.partialorder %v677, %v795
        %vm1593 = vcmp.eq.f32.partialorder %v681, %v798
        %vm1594 = vcmp.eq.f32.partialorder %v683, %v798
        %vm1595 = vcmp.eq.f32.partialorder %v687, %v801
        %vm1596 = vcmp.eq.f32.partialorder %v689, %v801
        %vm1597 = vcmp.eq.f32.partialorder %v693, %v804
        %vm1598 = vcmp.eq.f32.partialorder %v695, %v804
        %vm1599 = vcmp.eq.f32.partialorder %v699, %v807
        %vm1600 = vcmp.eq.f32.partialorder %v701, %v807
        %vm1601 = vcmp.eq.f32.partialorder %v705, %v810
        %vm1602 = vcmp.eq.f32.partialorder %v707, %v810
        %vm1603 = vcmp.eq.f32.partialorder %v711, %v813
        %vm1604 = vcmp.eq.f32.partialorder %v713, %v813
        %vm1605 = vcmp.eq.f32.partialorder %v717, %v816
        %vm1606 = vcmp.eq.f32.partialorder %v719, %v816
        %v1607 = vsel %vm1543, %v1541, 2147483647
        %v1608 = vsel %vm1544, %v1542, 2147483647
        %v1609 = vsel %vm1545, %v1541, 2147483647
        %v1610 = vsel %vm1546, %v1542, 2147483647
        %v1611 = vsel %vm1547, %v1541, 2147483647
        %v1612 = vsel %vm1548, %v1542, 2147483647
        %v1613 = vsel %vm1549, %v1541, 2147483647
        %v1614 = vsel %vm1550, %v1542, 2147483647
        %v1615 = vsel %vm1551, %v1541, 2147483647
        %v1616 = vsel %vm1552, %v1542, 2147483647
        %v1617 = vsel %vm1553, %v1541, 2147483647
        %v1618 = vsel %vm1554, %v1542, 2147483647
        %v1619 = vsel %vm1555, %v1541, 2147483647
        %v1620 = vsel %vm1556, %v1542, 2147483647
        %v1621 = vsel %vm1557, %v1541, 2147483647
        %v1622 = vsel %vm1558, %v1542, 2147483647
        %v1623 = vsel %vm1559, %v1541, 2147483647
        %v1624 = vsel %vm1560, %v1542, 2147483647
        %v1625 = vsel %vm1561, %v1541, 2147483647
        %v1626 = vsel %vm1562, %v1542, 2147483647
        %v1627 = vsel %vm1563, %v1541, 2147483647
        %v1628 = vsel %vm1564, %v1542, 2147483647
        %v1629 = vsel %vm1565, %v1541, 2147483647
        %v1630 = vsel %vm1566, %v1542, 2147483647
        %v1631 = vsel %vm1567, %v1541, 2147483647
        %v1632 = vsel %vm1568, %v1542, 2147483647
        %v1633 = vsel %vm1569, %v1541, 2147483647
        %v1634 = vsel %vm1570, %v1542, 2147483647
        %v1635 = vsel %vm1571, %v1541, 2147483647
        %v1636 = vsel %vm1572, %v1542, 2147483647
        %v1637 = vsel %vm1573, %v1541, 2147483647
        %v1638 = vsel %vm1574, %v1542, 2147483647
        %v1639 = vsel %vm1575, %v1541, 2147483647
        %v1640 = vsel %vm1576, %v1542, 2147483647
        %v1641 = vsel %vm1577, %v1541, 2147483647
        %v1642 = vsel %vm1578, %v1542, 2147483647
        %v1643 = vsel %vm1579, %v1541, 2147483647
        %v1644 = vsel %vm1580, %v1542, 2147483647
        %v1645 = vsel %vm1581, %v1541, 2147483647
        %v1646 = vsel %vm1582, %v1542, 2147483647
        %v1647 = vsel %vm1583, %v1541, 2147483647
        %v1648 = vsel %vm1584, %v1542, 2147483647
        %v1649 = vsel %vm1585, %v1541, 2147483647
        %v1650 = vsel %vm1586, %v1542, 2147483647
        %v1651 = vsel %vm1587, %v1541, 2147483647
        %v1652 = vsel %vm1588, %v1542, 2147483647
        %v1653 = vsel %vm1589, %v1541, 2147483647
        %v1654 = vsel %vm1590, %v1542, 2147483647
        %v1655 = vsel %vm1591, %v1541, 2147483647
        %v1656 = vsel %vm1592, %v1542, 2147483647
        %v1657 = vsel %vm1593, %v1541, 2147483647
        %v1658 = vsel %vm1594, %v1542, 2147483647
        %v1659 = vsel %vm1595, %v1541, 2147483647
        %v1660 = vsel %vm1596, %v1542, 2147483647
        %v1661 = vsel %vm1597, %v1541, 2147483647
        %v1662 = vsel %vm1598, %v1542, 2147483647
        %v1663 = vsel %vm1599, %v1541, 2147483647
        %v1664 = vsel %vm1600, %v1542, 2147483647
        %v1665 = vsel %vm1601, %v1541, 2147483647
        %v1666 = vsel %vm1602, %v1542, 2147483647
        %v1667 = vsel %vm1603, %v1541, 2147483647
        %v1668 = vsel %vm1604, %v1542, 2147483647
        %v1669 = vsel %vm1605, %v1541, 2147483647
        %v1670 = vsel %vm1606, %v1542, 2147483647
        %vm1671 = vcmp.lt.s32.totalorder %v1607, %v1608
        %v1672 = vsel %vm1671, %v1607, %v1608
        %v1673 = vand.u32 %v1672, 65535
        %v1674 = vshra.s32 %v1672, 16
        %v1675 = vcvt.s32.f32 %v1673
        %v1676 = vcvt.s32.f32 %v1674
        %1677 = vmin.xlane.f32.xlu0 %v1676
        %v1678 = vpop.xlane.xlu0 %1677
        %vm1679 = vcmp.eq.f32.partialorder %v1676, %v1678
        %v1680 = vsel %vm1679, %v1675, inf
        %1681 = vmin.xlane.f32.xlu0 %v1680
        %v1682 = vpop.xlane.xlu0 %1681
        %v1683 = vcvt.f32.s32 %v1682
        %v1684 = vcvt.f32.s32 %v1678
        %v1685 = vshll.u32 %v1684, 16
        %v1686 = vadd.s32 %v1685, %v1683
        %vm1687 = vcmp.lt.s32.totalorder %v1609, %v1610
        %v1688 = vsel %vm1687, %v1609, %v1610
        %v1689 = vand.u32 %v1688, 65535
        %v1690 = vshra.s32 %v1688, 16
        %v1691 = vcvt.s32.f32 %v1689
        %v1692 = vcvt.s32.f32 %v1690
        %1693 = vmin.xlane.f32.xlu0 %v1692
        %v1694 = vpop.xlane.xlu0 %1693
        %vm1695 = vcmp.eq.f32.partialorder %v1692, %v1694
        %v1696 = vsel %vm1695, %v1691, inf
        %1697 = vmin.xlane.f32.xlu0 %v1696
        %v1698 = vpop.xlane.xlu0 %1697
        %v1699 = vcvt.f32.s32 %v1698
        %v1700 = vcvt.f32.s32 %v1694
        %v1701 = vshll.u32 %v1700, 16
        %v1702 = vadd.s32 %v1701, %v1699
        %vm1703 = vcmp.lt.s32.totalorder %v1611, %v1612
        %v1704 = vsel %vm1703, %v1611, %v1612
        %v1705 = vand.u32 %v1704, 65535
        %v1706 = vshra.s32 %v1704, 16
        %v1707 = vcvt.s32.f32 %v1705
        %v1708 = vcvt.s32.f32 %v1706
        %1709 = vmin.xlane.f32.xlu0 %v1708
        %v1710 = vpop.xlane.xlu0 %1709
        %vm1711 = vcmp.eq.f32.partialorder %v1708, %v1710
        %v1712 = vsel %vm1711, %v1707, inf
        %1713 = vmin.xlane.f32.xlu0 %v1712
        %v1714 = vpop.xlane.xlu0 %1713
        %v1715 = vcvt.f32.s32 %v1714
        %v1716 = vcvt.f32.s32 %v1710
        %v1717 = vshll.u32 %v1716, 16
        %v1718 = vadd.s32 %v1717, %v1715
        %vm1719 = vcmp.lt.s32.totalorder %v1613, %v1614
        %v1720 = vsel %vm1719, %v1613, %v1614
        %v1721 = vand.u32 %v1720, 65535
        %v1722 = vshra.s32 %v1720, 16
        %v1723 = vcvt.s32.f32 %v1721
        %v1724 = vcvt.s32.f32 %v1722
        %1725 = vmin.xlane.f32.xlu0 %v1724
        %v1726 = vpop.xlane.xlu0 %1725
        %vm1727 = vcmp.eq.f32.partialorder %v1724, %v1726
        %v1728 = vsel %vm1727, %v1723, inf
        %1729 = vmin.xlane.f32.xlu0 %v1728
        %v1730 = vpop.xlane.xlu0 %1729
        %v1731 = vcvt.f32.s32 %v1730
        %v1732 = vcvt.f32.s32 %v1726
        %v1733 = vshll.u32 %v1732, 16
        %v1734 = vadd.s32 %v1733, %v1731
        %vm1735 = vcmp.lt.s32.totalorder %v1615, %v1616
        %v1736 = vsel %vm1735, %v1615, %v1616
        %v1737 = vand.u32 %v1736, 65535
        %v1738 = vshra.s32 %v1736, 16
        %v1739 = vcvt.s32.f32 %v1737
        %v1740 = vcvt.s32.f32 %v1738
        %1741 = vmin.xlane.f32.xlu0 %v1740
        %v1742 = vpop.xlane.xlu0 %1741
        %vm1743 = vcmp.eq.f32.partialorder %v1740, %v1742
        %v1744 = vsel %vm1743, %v1739, inf
        %1745 = vmin.xlane.f32.xlu0 %v1744
        %v1746 = vpop.xlane.xlu0 %1745
        %v1747 = vcvt.f32.s32 %v1746
        %v1748 = vcvt.f32.s32 %v1742
        %v1749 = vshll.u32 %v1748, 16
        %v1750 = vadd.s32 %v1749, %v1747
        %vm1751 = vcmp.lt.s32.totalorder %v1617, %v1618
        %v1752 = vsel %vm1751, %v1617, %v1618
        %v1753 = vand.u32 %v1752, 65535
        %v1754 = vshra.s32 %v1752, 16
        %v1755 = vcvt.s32.f32 %v1753
        %v1756 = vcvt.s32.f32 %v1754
        %1757 = vmin.xlane.f32.xlu0 %v1756
        %v1758 = vpop.xlane.xlu0 %1757
        %vm1759 = vcmp.eq.f32.partialorder %v1756, %v1758
        %v1760 = vsel %vm1759, %v1755, inf
        %1761 = vmin.xlane.f32.xlu0 %v1760
        %v1762 = vpop.xlane.xlu0 %1761
        %v1763 = vcvt.f32.s32 %v1762
        %v1764 = vcvt.f32.s32 %v1758
        %v1765 = vshll.u32 %v1764, 16
        %v1766 = vadd.s32 %v1765, %v1763
        %vm1767 = vcmp.lt.s32.totalorder %v1619, %v1620
        %v1768 = vsel %vm1767, %v1619, %v1620
        %v1769 = vand.u32 %v1768, 65535
        %v1770 = vshra.s32 %v1768, 16
        %v1771 = vcvt.s32.f32 %v1769
        %v1772 = vcvt.s32.f32 %v1770
        %1773 = vmin.xlane.f32.xlu0 %v1772
        %v1774 = vpop.xlane.xlu0 %1773
        %vm1775 = vcmp.eq.f32.partialorder %v1772, %v1774
        %v1776 = vsel %vm1775, %v1771, inf
        %1777 = vmin.xlane.f32.xlu0 %v1776
        %v1778 = vpop.xlane.xlu0 %1777
        %v1779 = vcvt.f32.s32 %v1778
        %v1780 = vcvt.f32.s32 %v1774
        %v1781 = vshll.u32 %v1780, 16
        %v1782 = vadd.s32 %v1781, %v1779
        %vm1783 = vcmp.lt.s32.totalorder %v1621, %v1622
        %v1784 = vsel %vm1783, %v1621, %v1622
        %v1785 = vand.u32 %v1784, 65535
        %v1786 = vshra.s32 %v1784, 16
        %v1787 = vcvt.s32.f32 %v1785
        %v1788 = vcvt.s32.f32 %v1786
        %1789 = vmin.xlane.f32.xlu0 %v1788
        %v1790 = vpop.xlane.xlu0 %1789
        %vm1791 = vcmp.eq.f32.partialorder %v1788, %v1790
        %v1792 = vsel %vm1791, %v1787, inf
        %1793 = vmin.xlane.f32.xlu0 %v1792
        %v1794 = vpop.xlane.xlu0 %1793
        %v1795 = vcvt.f32.s32 %v1794
        %v1796 = vcvt.f32.s32 %v1790
        %v1797 = vshll.u32 %v1796, 16
        %v1798 = vadd.s32 %v1797, %v1795
        %vm1799 = vcmp.lt.s32.totalorder %v1623, %v1624
        %v1800 = vsel %vm1799, %v1623, %v1624
        %v1801 = vand.u32 %v1800, 65535
        %v1802 = vshra.s32 %v1800, 16
        %v1803 = vcvt.s32.f32 %v1801
        %v1804 = vcvt.s32.f32 %v1802
        %1805 = vmin.xlane.f32.xlu0 %v1804
        %v1806 = vpop.xlane.xlu0 %1805
        %vm1807 = vcmp.eq.f32.partialorder %v1804, %v1806
        %v1808 = vsel %vm1807, %v1803, inf
        %1809 = vmin.xlane.f32.xlu0 %v1808
        %v1810 = vpop.xlane.xlu0 %1809
        %v1811 = vcvt.f32.s32 %v1810
        %v1812 = vcvt.f32.s32 %v1806
        %v1813 = vshll.u32 %v1812, 16
        %v1814 = vadd.s32 %v1813, %v1811
        %vm1815 = vcmp.lt.s32.totalorder %v1625, %v1626
        %v1816 = vsel %vm1815, %v1625, %v1626
        %v1817 = vand.u32 %v1816, 65535
        %v1818 = vshra.s32 %v1816, 16
        %v1819 = vcvt.s32.f32 %v1817
        %v1820 = vcvt.s32.f32 %v1818
        %1821 = vmin.xlane.f32.xlu0 %v1820
        %v1822 = vpop.xlane.xlu0 %1821
        %vm1823 = vcmp.eq.f32.partialorder %v1820, %v1822
        %v1824 = vsel %vm1823, %v1819, inf
        %1825 = vmin.xlane.f32.xlu0 %v1824
        %v1826 = vpop.xlane.xlu0 %1825
        %v1827 = vcvt.f32.s32 %v1826
        %v1828 = vcvt.f32.s32 %v1822
        %v1829 = vshll.u32 %v1828, 16
        %v1830 = vadd.s32 %v1829, %v1827
        %vm1831 = vcmp.lt.s32.totalorder %v1627, %v1628
        %v1832 = vsel %vm1831, %v1627, %v1628
        %v1833 = vand.u32 %v1832, 65535
        %v1834 = vshra.s32 %v1832, 16
        %v1835 = vcvt.s32.f32 %v1833
        %v1836 = vcvt.s32.f32 %v1834
        %1837 = vmin.xlane.f32.xlu0 %v1836
        %v1838 = vpop.xlane.xlu0 %1837
        %vm1839 = vcmp.eq.f32.partialorder %v1836, %v1838
        %v1840 = vsel %vm1839, %v1835, inf
        %1841 = vmin.xlane.f32.xlu0 %v1840
        %v1842 = vpop.xlane.xlu0 %1841
        %v1843 = vcvt.f32.s32 %v1842
        %v1844 = vcvt.f32.s32 %v1838
        %v1845 = vshll.u32 %v1844, 16
        %v1846 = vadd.s32 %v1845, %v1843
        %vm1847 = vcmp.lt.s32.totalorder %v1629, %v1630
        %v1848 = vsel %vm1847, %v1629, %v1630
        %v1849 = vand.u32 %v1848, 65535
        %v1850 = vshra.s32 %v1848, 16
        %v1851 = vcvt.s32.f32 %v1849
        %v1852 = vcvt.s32.f32 %v1850
        %1853 = vmin.xlane.f32.xlu0 %v1852
        %v1854 = vpop.xlane.xlu0 %1853
        %vm1855 = vcmp.eq.f32.partialorder %v1852, %v1854
        %v1856 = vsel %vm1855, %v1851, inf
        %1857 = vmin.xlane.f32.xlu0 %v1856
        %v1858 = vpop.xlane.xlu0 %1857
        %v1859 = vcvt.f32.s32 %v1858
        %v1860 = vcvt.f32.s32 %v1854
        %v1861 = vshll.u32 %v1860, 16
        %v1862 = vadd.s32 %v1861, %v1859
        %vm1863 = vcmp.lt.s32.totalorder %v1631, %v1632
        %v1864 = vsel %vm1863, %v1631, %v1632
        %v1865 = vand.u32 %v1864, 65535
        %v1866 = vshra.s32 %v1864, 16
        %v1867 = vcvt.s32.f32 %v1865
        %v1868 = vcvt.s32.f32 %v1866
        %1869 = vmin.xlane.f32.xlu0 %v1868
        %v1870 = vpop.xlane.xlu0 %1869
        %vm1871 = vcmp.eq.f32.partialorder %v1868, %v1870
        %v1872 = vsel %vm1871, %v1867, inf
        %1873 = vmin.xlane.f32.xlu0 %v1872
        %v1874 = vpop.xlane.xlu0 %1873
        %v1875 = vcvt.f32.s32 %v1874
        %v1876 = vcvt.f32.s32 %v1870
        %v1877 = vshll.u32 %v1876, 16
        %v1878 = vadd.s32 %v1877, %v1875
        %vm1879 = vcmp.lt.s32.totalorder %v1633, %v1634
        %v1880 = vsel %vm1879, %v1633, %v1634
        %v1881 = vand.u32 %v1880, 65535
        %v1882 = vshra.s32 %v1880, 16
        %v1883 = vcvt.s32.f32 %v1881
        %v1884 = vcvt.s32.f32 %v1882
        %1885 = vmin.xlane.f32.xlu0 %v1884
        %v1886 = vpop.xlane.xlu0 %1885
        %vm1887 = vcmp.eq.f32.partialorder %v1884, %v1886
        %v1888 = vsel %vm1887, %v1883, inf
        %1889 = vmin.xlane.f32.xlu0 %v1888
        %v1890 = vpop.xlane.xlu0 %1889
        %v1891 = vcvt.f32.s32 %v1890
        %v1892 = vcvt.f32.s32 %v1886
        %v1893 = vshll.u32 %v1892, 16
        %v1894 = vadd.s32 %v1893, %v1891
        %vm1895 = vcmp.lt.s32.totalorder %v1635, %v1636
        %v1896 = vsel %vm1895, %v1635, %v1636
        %v1897 = vand.u32 %v1896, 65535
        %v1898 = vshra.s32 %v1896, 16
        %v1899 = vcvt.s32.f32 %v1897
        %v1900 = vcvt.s32.f32 %v1898
        %1901 = vmin.xlane.f32.xlu0 %v1900
        %v1902 = vpop.xlane.xlu0 %1901
        %vm1903 = vcmp.eq.f32.partialorder %v1900, %v1902
        %v1904 = vsel %vm1903, %v1899, inf
        %1905 = vmin.xlane.f32.xlu0 %v1904
        %v1906 = vpop.xlane.xlu0 %1905
        %v1907 = vcvt.f32.s32 %v1906
        %v1908 = vcvt.f32.s32 %v1902
        %v1909 = vshll.u32 %v1908, 16
        %v1910 = vadd.s32 %v1909, %v1907
        %vm1911 = vcmp.lt.s32.totalorder %v1637, %v1638
        %v1912 = vsel %vm1911, %v1637, %v1638
        %v1913 = vand.u32 %v1912, 65535
        %v1914 = vshra.s32 %v1912, 16
        %v1915 = vcvt.s32.f32 %v1913
        %v1916 = vcvt.s32.f32 %v1914
        %1917 = vmin.xlane.f32.xlu0 %v1916
        %v1918 = vpop.xlane.xlu0 %1917
        %vm1919 = vcmp.eq.f32.partialorder %v1916, %v1918
        %v1920 = vsel %vm1919, %v1915, inf
        %1921 = vmin.xlane.f32.xlu0 %v1920
        %v1922 = vpop.xlane.xlu0 %1921
        %v1923 = vcvt.f32.s32 %v1922
        %v1924 = vcvt.f32.s32 %v1918
        %v1925 = vshll.u32 %v1924, 16
        %v1926 = vadd.s32 %v1925, %v1923
        %vm1927 = vcmp.lt.s32.totalorder %v1639, %v1640
        %v1928 = vsel %vm1927, %v1639, %v1640
        %v1929 = vand.u32 %v1928, 65535
        %v1930 = vshra.s32 %v1928, 16
        %v1931 = vcvt.s32.f32 %v1929
        %v1932 = vcvt.s32.f32 %v1930
        %1933 = vmin.xlane.f32.xlu0 %v1932
        %v1934 = vpop.xlane.xlu0 %1933
        %vm1935 = vcmp.eq.f32.partialorder %v1932, %v1934
        %v1936 = vsel %vm1935, %v1931, inf
        %1937 = vmin.xlane.f32.xlu0 %v1936
        %v1938 = vpop.xlane.xlu0 %1937
        %v1939 = vcvt.f32.s32 %v1938
        %v1940 = vcvt.f32.s32 %v1934
        %v1941 = vshll.u32 %v1940, 16
        %v1942 = vadd.s32 %v1941, %v1939
        %vm1943 = vcmp.lt.s32.totalorder %v1641, %v1642
        %v1944 = vsel %vm1943, %v1641, %v1642
        %v1945 = vand.u32 %v1944, 65535
        %v1946 = vshra.s32 %v1944, 16
        %v1947 = vcvt.s32.f32 %v1945
        %v1948 = vcvt.s32.f32 %v1946
        %1949 = vmin.xlane.f32.xlu0 %v1948
        %v1950 = vpop.xlane.xlu0 %1949
        %vm1951 = vcmp.eq.f32.partialorder %v1948, %v1950
        %v1952 = vsel %vm1951, %v1947, inf
        %1953 = vmin.xlane.f32.xlu0 %v1952
        %v1954 = vpop.xlane.xlu0 %1953
        %v1955 = vcvt.f32.s32 %v1954
        %v1956 = vcvt.f32.s32 %v1950
        %v1957 = vshll.u32 %v1956, 16
        %v1958 = vadd.s32 %v1957, %v1955
        %vm1959 = vcmp.lt.s32.totalorder %v1643, %v1644
        %v1960 = vsel %vm1959, %v1643, %v1644
        %v1961 = vand.u32 %v1960, 65535
        %v1962 = vshra.s32 %v1960, 16
        %v1963 = vcvt.s32.f32 %v1961
        %v1964 = vcvt.s32.f32 %v1962
        %1965 = vmin.xlane.f32.xlu0 %v1964
        %v1966 = vpop.xlane.xlu0 %1965
        %vm1967 = vcmp.eq.f32.partialorder %v1964, %v1966
        %v1968 = vsel %vm1967, %v1963, inf
        %1969 = vmin.xlane.f32.xlu0 %v1968
        %v1970 = vpop.xlane.xlu0 %1969
        %v1971 = vcvt.f32.s32 %v1970
        %v1972 = vcvt.f32.s32 %v1966
        %v1973 = vshll.u32 %v1972, 16
        %v1974 = vadd.s32 %v1973, %v1971
        %vm1975 = vcmp.lt.s32.totalorder %v1645, %v1646
        %v1976 = vsel %vm1975, %v1645, %v1646
        %v1977 = vand.u32 %v1976, 65535
        %v1978 = vshra.s32 %v1976, 16
        %v1979 = vcvt.s32.f32 %v1977
        %v1980 = vcvt.s32.f32 %v1978
        %1981 = vmin.xlane.f32.xlu0 %v1980
        %v1982 = vpop.xlane.xlu0 %1981
        %vm1983 = vcmp.eq.f32.partialorder %v1980, %v1982
        %v1984 = vsel %vm1983, %v1979, inf
        %1985 = vmin.xlane.f32.xlu0 %v1984
        %v1986 = vpop.xlane.xlu0 %1985
        %v1987 = vcvt.f32.s32 %v1986
        %v1988 = vcvt.f32.s32 %v1982
        %v1989 = vshll.u32 %v1988, 16
        %v1990 = vadd.s32 %v1989, %v1987
        %vm1991 = vcmp.lt.s32.totalorder %v1647, %v1648
        %v1992 = vsel %vm1991, %v1647, %v1648
        %v1993 = vand.u32 %v1992, 65535
        %v1994 = vshra.s32 %v1992, 16
        %v1995 = vcvt.s32.f32 %v1993
        %v1996 = vcvt.s32.f32 %v1994
        %1997 = vmin.xlane.f32.xlu0 %v1996
        %v1998 = vpop.xlane.xlu0 %1997
        %vm1999 = vcmp.eq.f32.partialorder %v1996, %v1998
        %v2000 = vsel %vm1999, %v1995, inf
        %2001 = vmin.xlane.f32.xlu0 %v2000
        %v2002 = vpop.xlane.xlu0 %2001
        %v2003 = vcvt.f32.s32 %v2002
        %v2004 = vcvt.f32.s32 %v1998
        %v2005 = vshll.u32 %v2004, 16
        %v2006 = vadd.s32 %v2005, %v2003
        %vm2007 = vcmp.lt.s32.totalorder %v1649, %v1650
        %v2008 = vsel %vm2007, %v1649, %v1650
        %v2009 = vand.u32 %v2008, 65535
        %v2010 = vshra.s32 %v2008, 16
        %v2011 = vcvt.s32.f32 %v2009
        %v2012 = vcvt.s32.f32 %v2010
        %2013 = vmin.xlane.f32.xlu0 %v2012
        %v2014 = vpop.xlane.xlu0 %2013
        %vm2015 = vcmp.eq.f32.partialorder %v2012, %v2014
        %v2016 = vsel %vm2015, %v2011, inf
        %2017 = vmin.xlane.f32.xlu0 %v2016
        %v2018 = vpop.xlane.xlu0 %2017
        %v2019 = vcvt.f32.s32 %v2018
        %v2020 = vcvt.f32.s32 %v2014
        %v2021 = vshll.u32 %v2020, 16
        %v2022 = vadd.s32 %v2021, %v2019
        %vm2023 = vcmp.lt.s32.totalorder %v1651, %v1652
        %v2024 = vsel %vm2023, %v1651, %v1652
        %v2025 = vand.u32 %v2024, 65535
        %v2026 = vshra.s32 %v2024, 16
        %v2027 = vcvt.s32.f32 %v2025
        %v2028 = vcvt.s32.f32 %v2026
        %2029 = vmin.xlane.f32.xlu0 %v2028
        %v2030 = vpop.xlane.xlu0 %2029
        %vm2031 = vcmp.eq.f32.partialorder %v2028, %v2030
        %v2032 = vsel %vm2031, %v2027, inf
        %2033 = vmin.xlane.f32.xlu0 %v2032
        %v2034 = vpop.xlane.xlu0 %2033
        %v2035 = vcvt.f32.s32 %v2034
        %v2036 = vcvt.f32.s32 %v2030
        %v2037 = vshll.u32 %v2036, 16
        %v2038 = vadd.s32 %v2037, %v2035
        %vm2039 = vcmp.lt.s32.totalorder %v1653, %v1654
        %v2040 = vsel %vm2039, %v1653, %v1654
        %v2041 = vand.u32 %v2040, 65535
        %v2042 = vshra.s32 %v2040, 16
        %v2043 = vcvt.s32.f32 %v2041
        %v2044 = vcvt.s32.f32 %v2042
        %2045 = vmin.xlane.f32.xlu0 %v2044
        %v2046 = vpop.xlane.xlu0 %2045
        %vm2047 = vcmp.eq.f32.partialorder %v2044, %v2046
        %v2048 = vsel %vm2047, %v2043, inf
        %2049 = vmin.xlane.f32.xlu0 %v2048
        %v2050 = vpop.xlane.xlu0 %2049
        %v2051 = vcvt.f32.s32 %v2050
        %v2052 = vcvt.f32.s32 %v2046
        %v2053 = vshll.u32 %v2052, 16
        %v2054 = vadd.s32 %v2053, %v2051
        %vm2055 = vcmp.lt.s32.totalorder %v1655, %v1656
        %v2056 = vsel %vm2055, %v1655, %v1656
        %v2057 = vand.u32 %v2056, 65535
        %v2058 = vshra.s32 %v2056, 16
        %v2059 = vcvt.s32.f32 %v2057
        %v2060 = vcvt.s32.f32 %v2058
        %2061 = vmin.xlane.f32.xlu0 %v2060
        %v2062 = vpop.xlane.xlu0 %2061
        %vm2063 = vcmp.eq.f32.partialorder %v2060, %v2062
        %v2064 = vsel %vm2063, %v2059, inf
        %2065 = vmin.xlane.f32.xlu0 %v2064
        %v2066 = vpop.xlane.xlu0 %2065
        %v2067 = vcvt.f32.s32 %v2066
        %v2068 = vcvt.f32.s32 %v2062
        %v2069 = vshll.u32 %v2068, 16
        %v2070 = vadd.s32 %v2069, %v2067
        %vm2071 = vcmp.lt.s32.totalorder %v1657, %v1658
        %v2072 = vsel %vm2071, %v1657, %v1658
        %v2073 = vand.u32 %v2072, 65535
        %v2074 = vshra.s32 %v2072, 16
        %v2075 = vcvt.s32.f32 %v2073
        %v2076 = vcvt.s32.f32 %v2074
        %2077 = vmin.xlane.f32.xlu0 %v2076
        %v2078 = vpop.xlane.xlu0 %2077
        %vm2079 = vcmp.eq.f32.partialorder %v2076, %v2078
        %v2080 = vsel %vm2079, %v2075, inf
        %2081 = vmin.xlane.f32.xlu0 %v2080
        %v2082 = vpop.xlane.xlu0 %2081
        %v2083 = vcvt.f32.s32 %v2082
        %v2084 = vcvt.f32.s32 %v2078
        %v2085 = vshll.u32 %v2084, 16
        %v2086 = vadd.s32 %v2085, %v2083
        %vm2087 = vcmp.lt.s32.totalorder %v1659, %v1660
        %v2088 = vsel %vm2087, %v1659, %v1660
        %v2089 = vand.u32 %v2088, 65535
        %v2090 = vshra.s32 %v2088, 16
        %v2091 = vcvt.s32.f32 %v2089
        %v2092 = vcvt.s32.f32 %v2090
        %2093 = vmin.xlane.f32.xlu0 %v2092
        %v2094 = vpop.xlane.xlu0 %2093
        %vm2095 = vcmp.eq.f32.partialorder %v2092, %v2094
        %v2096 = vsel %vm2095, %v2091, inf
        %2097 = vmin.xlane.f32.xlu0 %v2096
        %v2098 = vpop.xlane.xlu0 %2097
        %v2099 = vcvt.f32.s32 %v2098
        %v2100 = vcvt.f32.s32 %v2094
        %v2101 = vshll.u32 %v2100, 16
        %v2102 = vadd.s32 %v2101, %v2099
        %vm2103 = vcmp.lt.s32.totalorder %v1661, %v1662
        %v2104 = vsel %vm2103, %v1661, %v1662
        %v2105 = vand.u32 %v2104, 65535
        %v2106 = vshra.s32 %v2104, 16
        %v2107 = vcvt.s32.f32 %v2105
        %v2108 = vcvt.s32.f32 %v2106
        %2109 = vmin.xlane.f32.xlu0 %v2108
        %v2110 = vpop.xlane.xlu0 %2109
        %vm2111 = vcmp.eq.f32.partialorder %v2108, %v2110
        %v2112 = vsel %vm2111, %v2107, inf
        %2113 = vmin.xlane.f32.xlu0 %v2112
        %v2114 = vpop.xlane.xlu0 %2113
        %v2115 = vcvt.f32.s32 %v2114
        %v2116 = vcvt.f32.s32 %v2110
        %v2117 = vshll.u32 %v2116, 16
        %v2118 = vadd.s32 %v2117, %v2115
        %vm2119 = vcmp.lt.s32.totalorder %v1663, %v1664
        %v2120 = vsel %vm2119, %v1663, %v1664
        %v2121 = vand.u32 %v2120, 65535
        %v2122 = vshra.s32 %v2120, 16
        %v2123 = vcvt.s32.f32 %v2121
        %v2124 = vcvt.s32.f32 %v2122
        %2125 = vmin.xlane.f32.xlu0 %v2124
        %v2126 = vpop.xlane.xlu0 %2125
        %vm2127 = vcmp.eq.f32.partialorder %v2124, %v2126
        %v2128 = vsel %vm2127, %v2123, inf
        %2129 = vmin.xlane.f32.xlu0 %v2128
        %v2130 = vpop.xlane.xlu0 %2129
        %v2131 = vcvt.f32.s32 %v2130
        %v2132 = vcvt.f32.s32 %v2126
        %v2133 = vshll.u32 %v2132, 16
        %v2134 = vadd.s32 %v2133, %v2131
        %vm2135 = vcmp.lt.s32.totalorder %v1665, %v1666
        %v2136 = vsel %vm2135, %v1665, %v1666
        %v2137 = vand.u32 %v2136, 65535
        %v2138 = vshra.s32 %v2136, 16
        %v2139 = vcvt.s32.f32 %v2137
        %v2140 = vcvt.s32.f32 %v2138
        %2141 = vmin.xlane.f32.xlu0 %v2140
        %v2142 = vpop.xlane.xlu0 %2141
        %vm2143 = vcmp.eq.f32.partialorder %v2140, %v2142
        %v2144 = vsel %vm2143, %v2139, inf
        %2145 = vmin.xlane.f32.xlu0 %v2144
        %v2146 = vpop.xlane.xlu0 %2145
        %v2147 = vcvt.f32.s32 %v2146
        %v2148 = vcvt.f32.s32 %v2142
        %v2149 = vshll.u32 %v2148, 16
        %v2150 = vadd.s32 %v2149, %v2147
        %vm2151 = vcmp.lt.s32.totalorder %v1667, %v1668
        %v2152 = vsel %vm2151, %v1667, %v1668
        %v2153 = vand.u32 %v2152, 65535
        %v2154 = vshra.s32 %v2152, 16
        %v2155 = vcvt.s32.f32 %v2153
        %v2156 = vcvt.s32.f32 %v2154
        %2157 = vmin.xlane.f32.xlu0 %v2156
        %v2158 = vpop.xlane.xlu0 %2157
        %vm2159 = vcmp.eq.f32.partialorder %v2156, %v2158
        %v2160 = vsel %vm2159, %v2155, inf
        %2161 = vmin.xlane.f32.xlu0 %v2160
        %v2162 = vpop.xlane.xlu0 %2161
        %v2163 = vcvt.f32.s32 %v2162
        %v2164 = vcvt.f32.s32 %v2158
        %v2165 = vshll.u32 %v2164, 16
        %v2166 = vadd.s32 %v2165, %v2163
        %vm2167 = vcmp.lt.s32.totalorder %v1669, %v1670
        %v2168 = vsel %vm2167, %v1669, %v1670
        %v2169 = vand.u32 %v2168, 65535
        %v2170 = vshra.s32 %v2168, 16
        %v2171 = vcvt.s32.f32 %v2169
        %v2172 = vcvt.s32.f32 %v2170
        %2173 = vmin.xlane.f32.xlu0 %v2172
        %v2174 = vpop.xlane.xlu0 %2173
        %vm2175 = vcmp.eq.f32.partialorder %v2172, %v2174
        %v2176 = vsel %vm2175, %v2171, inf
        %2177 = vmin.xlane.f32.xlu0 %v2176
        %v2178 = vpop.xlane.xlu0 %2177
        %v2179 = vcvt.f32.s32 %v2178
        %v2180 = vcvt.f32.s32 %v2174
        %v2181 = vshll.u32 %v2180, 16
        %v2182 = vadd.s32 %v2181, %v2179
        %2183 = vst [vmem:[%s380] sm:$0xff] %v1137
        %2184 = vst [vmem:[%s380 + $0x8] sm:$0xff] %v1138
        %2185 = vst [vmem:[%s380 + $0x10] sm:$0xff] %v1139
        %2186 = vst [vmem:[%s380 + $0x18] sm:$0xff] %v1140
        %2187 = vst [vmem:[%s380 + $0x20] sm:$0xff] %v1141
        %2188 = vst [vmem:[%s380 + $0x28] sm:$0xff] %v1142
        %2189 = vst [vmem:[%s380 + $0x30] sm:$0xff] %v1143
        %2190 = vst [vmem:[%s380 + $0x38] sm:$0xff] %v1144
        %2191 = vst [vmem:[%s380 + $0x40] sm:$0xff] %v1145
        %2192 = vst [vmem:[%s380 + $0x48] sm:$0xff] %v1146
        %2193 = vst [vmem:[%s380 + $0x50] sm:$0xff] %v1147
        %2194 = vst [vmem:[%s380 + $0x58] sm:$0xff] %v1148
        %2195 = vst [vmem:[%s380 + $0x60] sm:$0xff] %v1149
        %2196 = vst [vmem:[%s380 + $0x68] sm:$0xff] %v1150
        %2197 = vst [vmem:[%s380 + $0x70] sm:$0xff] %v1151
        %2198 = vst [vmem:[%s380 + $0x78] sm:$0xff] %v1152
        %2199 = vst [vmem:[%s380 + $0x80] sm:$0xff] %v1153
        %2200 = vst [vmem:[%s380 + $0x88] sm:$0xff] %v1154
        %2201 = vst [vmem:[%s380 + $0x90] sm:$0xff] %v1155
        %2202 = vst [vmem:[%s380 + $0x98] sm:$0xff] %v1156
        %2203 = vst [vmem:[%s380 + $0xa0] sm:$0xff] %v1157
        %2204 = vst [vmem:[%s380 + $0xa8] sm:$0xff] %v1158
        %2205 = vst [vmem:[%s380 + $0xb0] sm:$0xff] %v1159
        %2206 = vst [vmem:[%s380 + $0xb8] sm:$0xff] %v1160
        %2207 = vst [vmem:[%s380 + $0xc0] sm:$0xff] %v1161
        %2208 = vst [vmem:[%s380 + $0xc8] sm:$0xff] %v1162
        %2209 = vst [vmem:[%s380 + $0xd0] sm:$0xff] %v1163
        %2210 = vst [vmem:[%s380 + $0xd8] sm:$0xff] %v1164
        %2211 = vst [vmem:[%s380 + $0xe0] sm:$0xff] %v1165
        %2212 = vst [vmem:[%s380 + $0xe8] sm:$0xff] %v1166
        %2213 = vst [vmem:[%s380 + $0xf0] sm:$0xff] %v1167
        %2214 = vst [vmem:[%s380 + $0xf8] sm:$0xff] %v1168
        %2215 = vst [vmem:[%s380 + $0x100] sm:$0xff] %v1169
        %2216 = vst [vmem:[%s380 + $0x108] sm:$0xff] %v1170
        %2217 = vst [vmem:[%s380 + $0x110] sm:$0xff] %v1171
        %2218 = vst [vmem:[%s380 + $0x118] sm:$0xff] %v1172
        %2219 = vst [vmem:[%s380 + $0x120] sm:$0xff] %v1173
        %2220 = vst [vmem:[%s380 + $0x128] sm:$0xff] %v1174
        %2221 = vst [vmem:[%s380 + $0x130] sm:$0xff] %v1175
        %2222 = vst [vmem:[%s380 + $0x138] sm:$0xff] %v1176
        %2223 = vst [vmem:[%s380 + $0x140] sm:$0xff] %v1177
        %2224 = vst [vmem:[%s380 + $0x148] sm:$0xff] %v1178
        %2225 = vst [vmem:[%s380 + $0x150] sm:$0xff] %v1179
        %2226 = vst [vmem:[%s380 + $0x158] sm:$0xff] %v1180
        %2227 = vst [vmem:[%s380 + $0x160] sm:$0xff] %v1181
        %2228 = vst [vmem:[%s380 + $0x168] sm:$0xff] %v1182
        %2229 = vst [vmem:[%s380 + $0x170] sm:$0xff] %v1183
        %2230 = vst [vmem:[%s380 + $0x178] sm:$0xff] %v1184
        %2231 = vst [vmem:[%s380 + $0x180] sm:$0xff] %v1185
        %2232 = vst [vmem:[%s380 + $0x188] sm:$0xff] %v1186
        %2233 = vst [vmem:[%s380 + $0x190] sm:$0xff] %v1187
        %2234 = vst [vmem:[%s380 + $0x198] sm:$0xff] %v1188
        %2235 = vst [vmem:[%s380 + $0x1a0] sm:$0xff] %v1189
        %2236 = vst [vmem:[%s380 + $0x1a8] sm:$0xff] %v1190
        %2237 = vst [vmem:[%s380 + $0x1b0] sm:$0xff] %v1191
        %2238 = vst [vmem:[%s380 + $0x1b8] sm:$0xff] %v1192
        %2239 = vst [vmem:[%s380 + $0x1c0] sm:$0xff] %v1193
        %2240 = vst [vmem:[%s380 + $0x1c8] sm:$0xff] %v1194
        %2241 = vst [vmem:[%s380 + $0x1d0] sm:$0xff] %v1195
        %2242 = vst [vmem:[%s380 + $0x1d8] sm:$0xff] %v1196
        %2243 = vst [vmem:[%s380 + $0x1e0] sm:$0xff] %v1197
        %2244 = vst [vmem:[%s380 + $0x1e8] sm:$0xff] %v1198
        %2245 = vst [vmem:[%s380 + $0x1f0] sm:$0xff] %v1199
        %2246 = vst [vmem:[%s380 + $0x1f8] sm:$0xff] %v1200
        %2247 = vst [vmem:[%s387] sm:$0xff] %v1350
        %2248 = vst [vmem:[%s387 + $0x8] sm:$0xff] %v1352
        %2249 = vst [vmem:[%s387 + $0x10] sm:$0xff] %v1356
        %2250 = vst [vmem:[%s387 + $0x18] sm:$0xff] %v1358
        %2251 = vst [vmem:[%s387 + $0x20] sm:$0xff] %v1362
        %2252 = vst [vmem:[%s387 + $0x28] sm:$0xff] %v1364
        %2253 = vst [vmem:[%s387 + $0x30] sm:$0xff] %v1368
        %2254 = vst [vmem:[%s387 + $0x38] sm:$0xff] %v1370
        %2255 = vst [vmem:[%s387 + $0x40] sm:$0xff] %v1374
        %2256 = vst [vmem:[%s387 + $0x48] sm:$0xff] %v1376
        %2257 = vst [vmem:[%s387 + $0x50] sm:$0xff] %v1380
        %2258 = vst [vmem:[%s387 + $0x58] sm:$0xff] %v1382
        %2259 = vst [vmem:[%s387 + $0x60] sm:$0xff] %v1386
        %2260 = vst [vmem:[%s387 + $0x68] sm:$0xff] %v1388
        %2261 = vst [vmem:[%s387 + $0x70] sm:$0xff] %v1392
        %2262 = vst [vmem:[%s387 + $0x78] sm:$0xff] %v1394
        %2263 = vst [vmem:[%s387 + $0x80] sm:$0xff] %v1398
        %2264 = vst [vmem:[%s387 + $0x88] sm:$0xff] %v1400
        %2265 = vst [vmem:[%s387 + $0x90] sm:$0xff] %v1404
        %2266 = vst [vmem:[%s387 + $0x98] sm:$0xff] %v1406
        %2267 = vst [vmem:[%s387 + $0xa0] sm:$0xff] %v1410
        %2268 = vst [vmem:[%s387 + $0xa8] sm:$0xff] %v1412
        %2269 = vst [vmem:[%s387 + $0xb0] sm:$0xff] %v1416
        %2270 = vst [vmem:[%s387 + $0xb8] sm:$0xff] %v1418
        %2271 = vst [vmem:[%s387 + $0xc0] sm:$0xff] %v1422
        %2272 = vst [vmem:[%s387 + $0xc8] sm:$0xff] %v1424
        %2273 = vst [vmem:[%s387 + $0xd0] sm:$0xff] %v1428
        %2274 = vst [vmem:[%s387 + $0xd8] sm:$0xff] %v1430
        %2275 = vst [vmem:[%s387 + $0xe0] sm:$0xff] %v1434
        %2276 = vst [vmem:[%s387 + $0xe8] sm:$0xff] %v1436
        %2277 = vst [vmem:[%s387 + $0xf0] sm:$0xff] %v1440
        %2278 = vst [vmem:[%s387 + $0xf8] sm:$0xff] %v1442
        %2279 = vst [vmem:[%s387 + $0x100] sm:$0xff] %v1446
        %2280 = vst [vmem:[%s387 + $0x108] sm:$0xff] %v1448
        %2281 = vst [vmem:[%s387 + $0x110] sm:$0xff] %v1452
        %2282 = vst [vmem:[%s387 + $0x118] sm:$0xff] %v1454
        %2283 = vst [vmem:[%s387 + $0x120] sm:$0xff] %v1458
        %2284 = vst [vmem:[%s387 + $0x128] sm:$0xff] %v1460
        %2285 = vst [vmem:[%s387 + $0x130] sm:$0xff] %v1464
        %2286 = vst [vmem:[%s387 + $0x138] sm:$0xff] %v1466
        %2287 = vst [vmem:[%s387 + $0x140] sm:$0xff] %v1470
        %2288 = vst [vmem:[%s387 + $0x148] sm:$0xff] %v1472
        %2289 = vst [vmem:[%s387 + $0x150] sm:$0xff] %v1476
        %2290 = vst [vmem:[%s387 + $0x158] sm:$0xff] %v1478
        %2291 = vst [vmem:[%s387 + $0x160] sm:$0xff] %v1482
        %2292 = vst [vmem:[%s387 + $0x168] sm:$0xff] %v1484
        %2293 = vst [vmem:[%s387 + $0x170] sm:$0xff] %v1488
        %2294 = vst [vmem:[%s387 + $0x178] sm:$0xff] %v1490
        %2295 = vst [vmem:[%s387 + $0x180] sm:$0xff] %v1494
        %2296 = vst [vmem:[%s387 + $0x188] sm:$0xff] %v1496
        %2297 = vst [vmem:[%s387 + $0x190] sm:$0xff] %v1500
        %2298 = vst [vmem:[%s387 + $0x198] sm:$0xff] %v1502
        %2299 = vst [vmem:[%s387 + $0x1a0] sm:$0xff] %v1506
        %2300 = vst [vmem:[%s387 + $0x1a8] sm:$0xff] %v1508
        %2301 = vst [vmem:[%s387 + $0x1b0] sm:$0xff] %v1512
        %2302 = vst [vmem:[%s387 + $0x1b8] sm:$0xff] %v1514
        %2303 = vst [vmem:[%s387 + $0x1c0] sm:$0xff] %v1518
        %2304 = vst [vmem:[%s387 + $0x1c8] sm:$0xff] %v1520
        %2305 = vst [vmem:[%s387 + $0x1d0] sm:$0xff] %v1524
        %2306 = vst [vmem:[%s387 + $0x1d8] sm:$0xff] %v1526
        %2307 = vst [vmem:[%s387 + $0x1e0] sm:$0xff] %v1530
        %2308 = vst [vmem:[%s387 + $0x1e8] sm:$0xff] %v1532
        %2309 = vst [vmem:[%s387 + $0x1f0] sm:$0xff] %v1536
        %2310 = vst [vmem:[%s387 + $0x1f8] sm:$0xff] %v1538
        %vm2311 = vcmask 7168
        %2312 = vst.msk [vmem:[%s394] sm:$0xff] %vm2311, %v1686
        %2313 = vst.msk [vmem:[%s394 + $0x8] sm:$0xff] %vm2311, %v1702
        %2314 = vst.msk [vmem:[%s394 + $0x10] sm:$0xff] %vm2311, %v1718
        %2315 = vst.msk [vmem:[%s394 + $0x18] sm:$0xff] %vm2311, %v1734
        %2316 = vst.msk [vmem:[%s394 + $0x20] sm:$0xff] %vm2311, %v1750
        %2317 = vst.msk [vmem:[%s394 + $0x28] sm:$0xff] %vm2311, %v1766
        %2318 = vst.msk [vmem:[%s394 + $0x30] sm:$0xff] %vm2311, %v1782
        %2319 = vst.msk [vmem:[%s394 + $0x38] sm:$0xff] %vm2311, %v1798
        %2320 = vst.msk [vmem:[%s394 + $0x40] sm:$0xff] %vm2311, %v1814
        %2321 = vst.msk [vmem:[%s394 + $0x48] sm:$0xff] %vm2311, %v1830
        %2322 = vst.msk [vmem:[%s394 + $0x50] sm:$0xff] %vm2311, %v1846
        %2323 = vst.msk [vmem:[%s394 + $0x58] sm:$0xff] %vm2311, %v1862
        %2324 = vst.msk [vmem:[%s394 + $0x60] sm:$0xff] %vm2311, %v1878
        %2325 = vst.msk [vmem:[%s394 + $0x68] sm:$0xff] %vm2311, %v1894
        %2326 = vst.msk [vmem:[%s394 + $0x70] sm:$0xff] %vm2311, %v1910
        %2327 = vst.msk [vmem:[%s394 + $0x78] sm:$0xff] %vm2311, %v1926
        %2328 = vst.msk [vmem:[%s394 + $0x80] sm:$0xff] %vm2311, %v1942
        %2329 = vst.msk [vmem:[%s394 + $0x88] sm:$0xff] %vm2311, %v1958
        %2330 = vst.msk [vmem:[%s394 + $0x90] sm:$0xff] %vm2311, %v1974
        %2331 = vst.msk [vmem:[%s394 + $0x98] sm:$0xff] %vm2311, %v1990
        %2332 = vst.msk [vmem:[%s394 + $0xa0] sm:$0xff] %vm2311, %v2006
        %2333 = vst.msk [vmem:[%s394 + $0xa8] sm:$0xff] %vm2311, %v2022
        %2334 = vst.msk [vmem:[%s394 + $0xb0] sm:$0xff] %vm2311, %v2038
        %2335 = vst.msk [vmem:[%s394 + $0xb8] sm:$0xff] %vm2311, %v2054
        %2336 = vst.msk [vmem:[%s394 + $0xc0] sm:$0xff] %vm2311, %v2070
        %2337 = vst.msk [vmem:[%s394 + $0xc8] sm:$0xff] %vm2311, %v2086
        %2338 = vst.msk [vmem:[%s394 + $0xd0] sm:$0xff] %vm2311, %v2102
        %2339 = vst.msk [vmem:[%s394 + $0xd8] sm:$0xff] %vm2311, %v2118
        %2340 = vst.msk [vmem:[%s394 + $0xe0] sm:$0xff] %vm2311, %v2134
        %2341 = vst.msk [vmem:[%s394 + $0xe8] sm:$0xff] %vm2311, %v2150
        %2342 = vst.msk [vmem:[%s394 + $0xf0] sm:$0xff] %vm2311, %v2166
        %2343 = vst.msk [vmem:[%s394 + $0xf8] sm:$0xff] %vm2311, %v2182
        %s2344 = smul.u32 %s38, 256
        %v2347 = vcombine.low %v1279, %v1281
        %v2349 = vunpack.c.l.s4 1983009808
        %v2350 = vunpack.c.0.s8 %v2349
        %v2351 = vlaneseq
        %v2352 = vshrl.u32 %v2351, 7
        %v2353 = vsub.s32 %v2350, %v2352
        %v2354 = vrot.slane %v2347, %v2353
        %s2356 = sshra.s32 %s2344, 7
        %s2357 = sand.u32 %s2344, 127
        %s2358 = smul.addr %s2356, 2
        %s2359 = scalar_lea.vmem %s373, %s2358 [#allocation8]
        %2360 = vst [vmem:[%s2359] sm:$0xf] %v2354
        %s2361 = sand.u32 %s133, 1
        %s2362 = scalar_lea.sflag [#allocation4], %s2361
        %s2363 = sand.u32 %s133, 1
        %s2364 = smul.addr %s2363, 4
        %s2365 = scalar_lea.vmem [#allocation8], %s2364
        %s2366 = sand.u32 %s33, 1
        %s2367 = scalar_lea.sflag [#allocation10], %s2366
        %s2368 = sand.u32 %s161, 1
        %s2369 = smul.addr %s2368, 512
        %s2370 = scalar_lea.vmem [#allocation9], %s2369
        %s2371 = sand.u32 %s33, 1
        %s2372 = scalar_lea.sflag [#allocation10], %s2371
        %s2373 = sand.u32 %s189, 1
        %s2374 = smul.addr %s2373, 512
        %s2375 = scalar_lea.vmem [#allocation11], %s2374
        %s2376 = sand.u32 %s217, 1
        %s2377 = scalar_lea.sflag [#allocation13], %s2376
        %s2378 = sand.u32 %s217, 1
        %s2379 = smul.addr %s2378, 256
        %s2380 = scalar_lea.vmem [#allocation12], %s2379
        // Predicated region
        $region45: #{pix2pix_subnet_forward.1} parent=31 // pred_check
          %p2381 = pneg %p143
        $region46: #{pix2pix_subnet_forward.1} parent=31 // pred_check_branch
          %2383 = sbr.rel (%p2381) target = $region48
        $region47: #{pix2pix_subnet_forward.1} parent=31 // pred_region
          %s2385 = ssub.s32 64, 64
          %2386 = vsyncadd %s2362, %s2385
          %s2387 = smul.addr %s37, 2
          %s2388 = smul.addr %s2387, 32
          %s2389 = scalar_lea.hbm %s3, %s2388
          %s2391 = sshll.u32 %s2365, 4
          %s2392 = int_to_ptr.vmem [resolvable:$true] %s2391
          %2394 = dma.vmem_to_hbm [thread:$0]  %s2392, 64, %s2389, %s2362
        $region48: #{pix2pix_subnet_forward.1} parent=31 // pred_fallthru
          _
        // Predicated region
        $region49: #{pix2pix_subnet_forward.1} parent=31 // pred_check
          %p2395 = pneg %p171
        $region50: #{pix2pix_subnet_forward.1} parent=31 // pred_check_branch
          %2397 = sbr.rel (%p2395) target = $region52
        $region51: #{pix2pix_subnet_forward.1} parent=31 // pred_region
          %s2398 = smul.u32 32, %s38
          %s2400 = ssub.s32 8192, 8192
          %2401 = vsyncadd %s2367, %s2400
          %s2402 = smul.addr %s2398, 2
          %s2403 = smul.addr %s37, 64
          %s2404 = sadd.s32 %s2402, %s2403
          %s2405 = smul.addr %s2404, 128
          %s2406 = scalar_lea.hbm %s4, %s2405
          %s2407 = sshll.u32 %s2370, 4
          %s2408 = int_to_ptr.vmem [resolvable:$true] %s2407
          %2413 = dma.vmem_to_hbm [thread:$0]  %s2408, 8192, %s2406, %s2367, 256, 256, 16
        $region52: #{pix2pix_subnet_forward.1} parent=31 // pred_fallthru
          _
        // Predicated region
        $region53: #{pix2pix_subnet_forward.1} parent=31 // pred_check
          %p2414 = pneg %p199
        $region54: #{pix2pix_subnet_forward.1} parent=31 // pred_check_branch
          %2416 = sbr.rel (%p2414) target = $region56
        $region55: #{pix2pix_subnet_forward.1} parent=31 // pred_region
          %s2417 = smul.u32 2, %s38
          %s2419 = ssub.s32 8192, 8192
          %2420 = vsyncadd %s2372, %s2419
          %s2421 = smul.addr %s37, 64
          %s2422 = sadd.s32 %s2417, %s2421
          %s2423 = smul.addr %s2422, 128
          %s2424 = scalar_lea.hbm %s5, %s2423
          %s2425 = sshll.u32 %s2375, 4
          %s2426 = int_to_ptr.vmem [resolvable:$true] %s2425
          %2431 = dma.vmem_to_hbm [thread:$0]  %s2426, 8192, %s2424, %s2372, 256, 256, 16
        $region56: #{pix2pix_subnet_forward.1} parent=31 // pred_fallthru
          _
        // Predicated region
        $region57: #{pix2pix_subnet_forward.1} parent=31 // pred_check
          %p2432 = pneg %p227
        $region58: #{pix2pix_subnet_forward.1} parent=31 // pred_check_branch
          %2434 = sbr.rel (%p2432) target = $region60
        $region59: #{pix2pix_subnet_forward.1} parent=31 // pred_region
          %s2435 = smul.u32 32, %s38
          %s2437 = ssub.s32 4096, 4096
          %2438 = vsyncadd %s2377, %s2437
          %s2439 = smul.addr %s37, 32
          %s2440 = sadd.s32 %s2435, %s2439
          %s2441 = smul.addr %s2440, 128
          %s2442 = scalar_lea.hbm %s6, %s2441
          %s2443 = sshll.u32 %s2380, 4
          %s2444 = int_to_ptr.vmem [resolvable:$true] %s2443
          %2449 = dma.vmem_to_hbm [thread:$0]  %s2444, 4096, %s2442, %s2377, 128, 128, 8
        $region60: #{pix2pix_subnet_forward.1} parent=31 // pred_fallthru
          _
      $region32: #{pix2pix_subnet_forward.1} parent=5 // pred_fallthru
        _
      %p2450 = scmp.le.s32.totalorder 2, %s28
      // Predicated region
      $region61: #{pix2pix_subnet_forward.1} parent=5 // pred_check
        %p2451 = pneg %p2450
      $region62: #{pix2pix_subnet_forward.1} parent=5 // pred_check_branch
        %2453 = sbr.rel (%p2451) target = $region64
      $region63: #{pix2pix_subnet_forward.1} parent=5 // pred_region
        %s2454 = ssub.s32 %s28, 2
        // Predicated region
        $region65: #{pix2pix_subnet_forward.1} parent=63 // pred_check
          %p2455 = pneg %p149
        $region66: #{pix2pix_subnet_forward.1} parent=63 // pred_check_branch
          %2457 = sbr.rel (%p2455) target = $region68
        $region67: #{pix2pix_subnet_forward.1} parent=63 // pred_region
          %s2458 = sand.u32 %s134, 1
          %s2459 = scalar_lea.sflag [#allocation4], %s2458
          %s2460 = sand.u32 %s134, 1
          %s2461 = smul.addr %s2460, 4
          %s2462 = scalar_lea.vmem [#allocation8], %s2461
          %2463 = dma.done %s2459, 64
        $region68: #{pix2pix_subnet_forward.1} parent=63 // pred_fallthru
          _
        // Predicated region
        $region69: #{pix2pix_subnet_forward.1} parent=63 // pred_check
          %p2464 = pneg %p177
        $region70: #{pix2pix_subnet_forward.1} parent=63 // pred_check_branch
          %2466 = sbr.rel (%p2464) target = $region72
        $region71: #{pix2pix_subnet_forward.1} parent=63 // pred_region
          %s2467 = sand.u32 %s34, 1
          %s2468 = scalar_lea.sflag [#allocation10], %s2467
          %s2469 = sand.u32 %s162, 1
          %s2470 = smul.addr %s2469, 512
          %s2471 = scalar_lea.vmem [#allocation9], %s2470
          %2472 = dma.done %s2468, 8192
        $region72: #{pix2pix_subnet_forward.1} parent=63 // pred_fallthru
          _
        // Predicated region
        $region73: #{pix2pix_subnet_forward.1} parent=63 // pred_check
          %p2473 = pneg %p205
        $region74: #{pix2pix_subnet_forward.1} parent=63 // pred_check_branch
          %2475 = sbr.rel (%p2473) target = $region76
        $region75: #{pix2pix_subnet_forward.1} parent=63 // pred_region
          %s2476 = sand.u32 %s34, 1
          %s2477 = scalar_lea.sflag [#allocation10], %s2476
          %s2478 = sand.u32 %s190, 1
          %s2479 = smul.addr %s2478, 512
          %s2480 = scalar_lea.vmem [#allocation11], %s2479
          %2481 = dma.done %s2477, 8192
        $region76: #{pix2pix_subnet_forward.1} parent=63 // pred_fallthru
          _
        // Predicated region
        $region77: #{pix2pix_subnet_forward.1} parent=63 // pred_check
          %p2482 = pneg %p233
        $region78: #{pix2pix_subnet_forward.1} parent=63 // pred_check_branch
          %2484 = sbr.rel (%p2482) target = $region80
        $region79: #{pix2pix_subnet_forward.1} parent=63 // pred_region
          %s2485 = sand.u32 %s218, 1
          %s2486 = scalar_lea.sflag [#allocation13], %s2485
          %s2487 = sand.u32 %s218, 1
          %s2488 = smul.addr %s2487, 256
          %s2489 = scalar_lea.vmem [#allocation12], %s2488
          %2490 = dma.done %s2486, 4096
        $region80: #{pix2pix_subnet_forward.1} parent=63 // pred_fallthru
          _
      $region64: #{pix2pix_subnet_forward.1} parent=5 // pred_fallthru
        _
    $region6: #{pix2pix_subnet_forward.1} parent=1 // loop_footer
      %s32 = sadd.s32 1, %s28
    $region7: #{pix2pix_subnet_forward.1} parent=1 // loop_footer_branch
      %27 = sbr.rel target = $region3
    $region8: #{pix2pix_subnet_forward.1} parent=1 // loop_exit
      _
    %2491 = vsyncpa [#allocation3], 1
    %s2492 = scalar_lea.sflag [#allocation3], 1
    %2493 = vsyncpa %s2492, 1
    %2494 = vsyncpa [#allocation6], 1
    %s2495 = scalar_lea.sflag [#allocation6], 1
    %2496 = vsyncpa %s2495, 1
    %2497 = vsyncpa [#allocation4], 1
    %s2498 = scalar_lea.sflag [#allocation4], 1
    %2499 = vsyncpa %s2498, 1
    %2500 = vsyncpa [#allocation10], 1
    %s2501 = scalar_lea.sflag [#allocation10], 1
    %2502 = vsyncpa %s2501, 1
    %2503 = vsyncpa [#allocation13], 1
    %s2504 = scalar_lea.sflag [#allocation13], 1
    %2505 = vsyncpa %s2504, 1

</llo_original>
